<compile_context>
chip_gen: v7x
topology: tpu7x:2x2x1
jax: 0.10.0
libtpu: 0.0.40
codegen_flags: <defaults>
</compile_context>

<pallas_src>
import functools

import jax
import jax.numpy as jnp
from jax.experimental import pallas as pl
from jax.experimental.pallas import tpu as pltpu


# ----------------------------------------------------------------------------
# Generation-aware VMEM budgeting (v7x: 64 MiB / TC, v5e/v6e: 128 MiB).
# ----------------------------------------------------------------------------
def _vmem_capacity_bytes():
    try:
        info = pltpu.get_tpu_info()
        cap = getattr(info, "vmem_capacity_bytes", None)
        if cap:
            return int(cap)
    except Exception:
        pass
    return 64 * 1024 * 1024            # assume the tightest generation (v7x)


def _vmem_limits():
    cap = _vmem_capacity_bytes()
    limit = min((cap * 3) // 4, 96 * 1024 * 1024)   # 48 MiB on v7x, 96 MiB on v5e/v6e
    budget = limit - 8 * 1024 * 1024                # headroom for compiler temporaries
    return limit, budget


def _tree_sum(terms):
    """Pairwise reduction: exposes ILP on the 4 VALU slots (no serial add chain)."""
    terms = list(terms)
    while len(terms) > 1:
        nxt = [terms[i] + terms[i + 1] for i in range(0, len(terms) - 1, 2)]
        if len(terms) % 2:
            nxt.append(terms[-1])
        terms = nxt
    return terms[0]


# ----------------------------------------------------------------------------
# Prologue kernel: GTConv channel mix, done ONCE per layer.
#   out[wi][b, o, m, n] = sum_c softmax(w[wi])[o, c] * A[b, c, m, n]   (-> bf16)
# Grid = (b, i, j); each f32 A tile is read exactly once and produces all
# C_out (and both weight sets when first=True) outputs.
# ----------------------------------------------------------------------------
def _gtconv_mix_kernel(w_ref, a_ref, *out_refs, in_channels, out_channels):
    # w_ref : SMEM (n_w * C_out * C_in,) f32, already softmaxed, flattened
    # a_ref : VMEM (1, C_in, T, T) f32
    # out_refs : n_w refs of shape (1, C_out, T, T) in the matmul dtype
    for wi, out_ref in enumerate(out_refs):
        for o in range(out_channels):
            base = (wi * out_channels + o) * in_channels
            terms = [w_ref[base + c] * a_ref[0, c, :, :]
                     for c in range(in_channels)]
            out_ref[0, o, :, :] = _tree_sum(terms).astype(out_ref.dtype)


def _pick_mix_tile(n_pad, c_in, c_out, n_w, out_itemsize, budget):
    for t in (512, 256, 128):
        if n_pad % t:
            continue
        need = (2 * c_in * t * t * 4                      # A tile, double-buffered
                + n_w * 2 * c_out * t * t * out_itemsize)  # outputs, double-buffered
        if need + (2 << 20) <= budget:
            return t
    return 128


def _gtconv_mix(sw_flat, A_p, n_w, c_out, c_in, out_dtype, vmem_limit, budget):
    B = A_p.shape[0]
    n_pad = A_p.shape[-1]
    T = _pick_mix_tile(n_pad, c_in, c_out, n_w, jnp.dtype(out_dtype).itemsize, budget)
    grid = (B, n_pad // T, n_pad // T)

    a_spec = pl.BlockSpec((1, c_in, T, T), lambda b, i, j: (b, 0, i, j))
    o_spec = pl.BlockSpec((1, c_out, T, T), lambda b, i, j: (b, 0, i, j))

    outs = pl.pallas_call(
        functools.partial(_gtconv_mix_kernel,
                          in_channels=c_in, out_channels=c_out),
        out_shape=tuple(jax.ShapeDtypeStruct((B, c_out, n_pad, n_pad), out_dtype)
                        for _ in range(n_w)),
        grid=grid,
        in_specs=[pl.BlockSpec(memory_space=pltpu.MemorySpace.SMEM), a_spec],
        out_specs=tuple(o_spec for _ in range(n_w)),
        compiler_params=pltpu.CompilerParams(
            dimension_semantics=("parallel", "parallel", "parallel"),
            vmem_limit_bytes=vmem_limit),
    )(sw_flat, A_p)
    if not isinstance(outs, (tuple, list)):
        outs = (outs,)
    return outs


# ----------------------------------------------------------------------------
# Main kernel: pure tiled batched matmul (bf16 in, f32 MXU accumulation).
# Grid = (bo, i, j, k); the output tile (bo, i, j) is invariant over the
# innermost k axis, so it stays VMEM-resident and we accumulate into it
# directly (no scratch accumulator).
# ----------------------------------------------------------------------------
def _bmm_kernel(lhs_ref, rhs_ref, out_ref):
    @pl.when(pl.program_id(3) == 0)
    def _init():
        out_ref[...] = jnp.zeros_like(out_ref)

    out_ref[...] += jnp.dot(lhs_ref[...], rhs_ref[...],
                            preferred_element_type=jnp.float32)


def _pick_bmm_tiles(n_pad, in_itemsize, budget, max_tile=None):
    mn_cands = (1024, 512, 256, 128)   # 256-multiples first (2x256x256 MXU)
    k_cands = (512, 256, 128)
    if max_tile is not None:
        mn_cands = tuple(t for t in mn_cands if t <= max_tile) or (128,)
        k_cands = tuple(t for t in k_cands if t <= max_tile) or (128,)
    for tm in mn_cands:
        if n_pad % tm:
            continue
        for tk in k_cands:
            if n_pad % tk:
                continue
            need = (2 * tm * tk * in_itemsize      # lhs tile, double-buffered
                    + 2 * tk * tm * in_itemsize    # rhs tile, double-buffered
                    + 2 * tm * tm * 4)             # f32 out tile, double-buffered
            if need + (2 << 20) <= budget:
                return tm, tm, tk
    return 128, 128, 128


def _batched_matmul(lhs, rhs, vmem_limit, budget, max_tile=None):
    """lhs, rhs: (BO, N_pad, N_pad) -> f32 (BO, N_pad, N_pad)."""
    BO, n_pad, _ = lhs.shape
    TM, TN, TK = _pick_bmm_tiles(n_pad, jnp.dtype(lhs.dtype).itemsize, budget,
                                 max_tile=max_tile)
    grid = (BO, n_pad // TM, n_pad // TN, n_pad // TK)

    lhs_spec = pl.BlockSpec((None, TM, TK), lambda bo, i, j, k: (bo, i, k))
    rhs_spec = pl.BlockSpec((None, TK, TN), lambda bo, i, j, k: (bo, k, j))
    out_spec = pl.BlockSpec((None, TM, TN), lambda bo, i, j, k: (bo, i, j))

    return pl.pallas_call(
        _bmm_kernel,
        out_shape=jax.ShapeDtypeStruct((BO, n_pad, n_pad), jnp.float32),
        grid=grid,
        in_specs=[lhs_spec, rhs_spec],
        out_specs=out_spec,
        compiler_params=pltpu.CompilerParams(
            dimension_semantics=("parallel", "parallel", "parallel", "arbitrary"),
            vmem_limit_bytes=vmem_limit),
    )(lhs, rhs)


# ----------------------------------------------------------------------------
# Wrapper (GTLayer.forward)
# ----------------------------------------------------------------------------
def gtlayer_forward(A, weight1, weight2=None, H_prev=None, first=True,
                    matmul_dtype=jnp.bfloat16, max_tile=None):
    """A: (B, C_in, N, N).  weight*: (1, C_out, C_in, 1, 1) like the nn.Parameter.

    Returns (H, W) exactly as GTLayer.forward:
      H: (B, C_out, N, N) float32
      W: list of softmax(weight, dim=2) tensors, shape (1, C_out, C_in, 1, 1)
    matmul_dtype=jnp.float32 gives bit-closer parity (slower MXU path).
    """
    B, C_in, N, _ = A.shape
    C_out = weight1.shape[1]

    # softmax over in_channels (dim=2 of (1, C_out, C_in, 1, 1)) -- tiny glue
    sw1_full = jax.nn.softmax(weight1.astype(jnp.float32), axis=2)
    sw1 = sw1_full.reshape(C_out, C_in)

    # Pad N up to a multiple of 128: lane-dense blocks + (8,128) tiling.
    # Zero padding is exact for these (linear mix + matmul) operations.
    N_pad = ((N + 127) // 128) * 128
    pad_n = N_pad - N
    A_p = A.astype(jnp.float32)
    if pad_n:
        A_p = jnp.pad(A_p, ((0, 0), (0, 0), (0, pad_n), (0, pad_n)))

    vmem_limit, budget = _vmem_limits()

    if first:
        assert weight2 is not None
        sw2_full = jax.nn.softmax(weight2.astype(jnp.float32), axis=2)
        sw2 = sw2_full.reshape(C_out, C_in)
        sw_flat = jnp.concatenate([sw1.reshape(-1), sw2.reshape(-1)])
        A1, A2 = _gtconv_mix(sw_flat, A_p, 2, C_out, C_in, matmul_dtype,
                             vmem_limit, budget)
        lhs, rhs = A1, A2
        W = [sw1_full, sw2_full]
    else:
        assert H_prev is not None
        (A1,) = _gtconv_mix(sw1.reshape(-1), A_p, 1, C_out, C_in, matmul_dtype,
                            vmem_limit, budget)
        Hp = H_prev.astype(matmul_dtype)     # one-time cast, amortized over reuse
        if pad_n:
            Hp = jnp.pad(Hp, ((0, 0), (0, 0), (0, pad_n), (0, pad_n)))
        lhs, rhs = Hp, A1
        W = [sw1_full]

    # Flatten (B, C_out) into one leading parallel axis (torch.bmm semantics;
    # keeps megacore busy even for B == 1).
    lhs = lhs.reshape(B * C_out, N_pad, N_pad)
    rhs = rhs.reshape(B * C_out, N_pad, N_pad)

    H_pad = _batched_matmul(lhs, rhs, vmem_limit, budget, max_tile=max_tile)
    H_pad = H_pad.reshape(B, C_out, N_pad, N_pad)
    H = H_pad[:, :, :N, :N] if pad_n else H_pad
    return H, W


# ----------------------------------------------------------------------------
# Pure-JAX references for verification
# ----------------------------------------------------------------------------
def _ref_forward(A, weight1, weight2=None, H_prev=None, first=True,
                 matmul_dtype=jnp.float32):
    """matmul_dtype=bfloat16 mimics the kernel's MXU-input cast exactly."""
    C_out, C_in = weight1.shape[1], weight1.shape[2]
    sw1 = jax.nn.softmax(weight1.astype(jnp.float32), axis=2).reshape(C_out, C_in)
    a = jnp.einsum("oc,bcmn->bomn", sw1, A.astype(jnp.float32))
    if first:
        sw2 = jax.nn.softmax(weight2.astype(jnp.float32), axis=2).reshape(C_out, C_in)
        b = jnp.einsum("oc,bcmn->bomn", sw2, A.astype(jnp.float32))
        a = a.astype(matmul_dtype).astype(jnp.float32)
        b = b.astype(matmul_dtype).astype(jnp.float32)
        return jnp.einsum("bomk,bokn->bomn", a, b)
    a = a.astype(matmul_dtype).astype(jnp.float32)
    hp = H_prev.astype(matmul_dtype).astype(jnp.float32)
    return jnp.einsum("bomk,bokn->bomn", hp, a)


# ----------------------------------------------------------------------------
if __name__ == "__main__":
    key = jax.random.PRNGKey(0)

    # ---- small, module-consistent shapes -----------------------------------
    batch, in_channels, out_channels, N = 2, 4, 2, 16
    k_a, k_w1, k_w2 = jax.random.split(key, 3)
    A = jax.random.uniform(k_a, (batch, in_channels, N, N), jnp.float32)
    # nn.init.uniform_(weight, 0, 1): deterministic synthetic init
    weight1 = jax.random.uniform(k_w1, (1, out_channels, in_channels, 1, 1), jnp.float32)
    weight2 = jax.random.uniform(k_w2, (1, out_channels, in_channels, 1, 1), jnp.float32)

    # first=True layer
    H1, W1 = gtlayer_forward(A, weight1, weight2, first=True)
    H1 = jax.block_until_ready(H1)
    assert H1.shape == (batch, out_channels, N, N)
    ref1_bf16 = _ref_forward(A, weight1, weight2, first=True, matmul_dtype=jnp.bfloat16)
    ref1_f32 = _ref_forward(A, weight1, weight2, first=True)
    assert jnp.allclose(H1, ref1_bf16, rtol=2e-3, atol=2e-3), "first=True bf16 mismatch"
    assert jnp.allclose(H1, ref1_f32, rtol=2e-2, atol=2e-2), "first=True f32 mismatch"

    # first=False layer consuming H1 (as GTN stacks layers)
    H2, W2 = gtlayer_forward(A, weight1, H_prev=H1, first=False)
    H2 = jax.block_until_ready(H2)
    assert H2.shape == (batch, out_channels, N, N)
    ref2_bf16 = _ref_forward(A, weight1, H_prev=H1, first=False, matmul_dtype=jnp.bfloat16)
    ref2_f32 = _ref_forward(A, weight1, H_prev=H1, first=False)
    assert jnp.allclose(H2, ref2_bf16, rtol=2e-3, atol=2e-3), "first=False bf16 mismatch"
    assert jnp.allclose(H2, ref2_f32, rtol=2e-2, atol=2e-2), "first=False f32 mismatch"

    assert len(W1) == 2 and len(W2) == 1
    assert W1[0].shape == (1, out_channels, in_channels, 1, 1)

    # ---- multi-tile path: N=200 pads to 256; max_tile=128 forces a 2x2x2
    #      (i, j, k) grid so k-accumulation and pad-slicing are exercised. ----
    kb_a, kb_w1, kb_w2 = jax.random.split(jax.random.PRNGKey(1), 3)
    Nb, cinb, coutb = 200, 2, 2
    Ab = jax.random.uniform(kb_a, (1, cinb, Nb, Nb), jnp.float32)
    w1b = jax.random.uniform(kb_w1, (1, coutb, cinb, 1, 1), jnp.float32)
    w2b = jax.random.uniform(kb_w2, (1, coutb, cinb, 1, 1), jnp.float32)
    Hb, _ = gtlayer_forward(Ab, w1b, w2b, first=True, max_tile=128)
    Hb = jax.block_until_ready(Hb)
    assert Hb.shape == (1, coutb, Nb, Nb)
    refb = _ref_forward(Ab, w1b, w2b, first=True, matmul_dtype=jnp.bfloat16)
    assert jnp.allclose(Hb, refb, rtol=2e-3, atol=2e-3), "multi-tile mismatch"

    print("KERNEL_OK")
</pallas_src>

<mosaic_0001>
module attributes {stable_mosaic.version = 11 : i64} {
  func.func @_gtconv_mix_kernel(%arg0: i32, %arg1: i32, %arg2: i32, %arg3: memref<16xf32, #tpu.memory_space<smem>>, %arg4: memref<1x4x128x128xf32, #tpu.memory_space<vmem>>, %arg5: memref<1x2x128x128xbf16, #tpu.memory_space<vmem>>, %arg6: memref<1x2x128x128xbf16, #tpu.memory_space<vmem>>) attributes {dimension_semantics = [#tpu.dimension_semantics<parallel>, #tpu.dimension_semantics<parallel>, #tpu.dimension_semantics<parallel>], iteration_bounds = array<i64: 2, 1, 1>, scalar_prefetch = 0 : i64, scratch_operands = 0 : i64, tpu.core_type = #tpu.core_type<tc>, window_params = [{transform_indices = @transform_0, window_bounds = array<i64: 16>}, {transform_indices = @transform_1, window_bounds = array<i64: 1, 4, 128, 128>}, {transform_indices = @transform_2, window_bounds = array<i64: 1, 2, 128, 128>}, {transform_indices = @transform_3, window_bounds = array<i64: 1, 2, 128, 128>}]} {
    %c0 = arith.constant 0 : index
    %0 = memref.load %arg3[%c0] : memref<16xf32, #tpu.memory_space<smem>>
    %c0_0 = arith.constant 0 : index
    %c0_1 = arith.constant 0 : index
    %c0_2 = arith.constant 0 : index
    %c0_3 = arith.constant 0 : index
    %1 = vector.load %arg4[%c0_0, %c0_1, %c0_2, %c0_3] : memref<1x4x128x128xf32, #tpu.memory_space<vmem>>, vector<1x1x128x128xf32>
    %2 = vector.shape_cast %1 : vector<1x1x128x128xf32> to vector<128x128xf32>
    %3 = vector.broadcast %0 : f32 to vector<128x128xf32>
    %4 = arith.mulf %3, %2 : vector<128x128xf32>
    %c1 = arith.constant 1 : index
    %5 = memref.load %arg3[%c1] : memref<16xf32, #tpu.memory_space<smem>>
    %c0_4 = arith.constant 0 : index
    %c1_5 = arith.constant 1 : index
    %c0_6 = arith.constant 0 : index
    %c0_7 = arith.constant 0 : index
    %6 = vector.load %arg4[%c0_4, %c1_5, %c0_6, %c0_7] : memref<1x4x128x128xf32, #tpu.memory_space<vmem>>, vector<1x1x128x128xf32>
    %7 = vector.shape_cast %6 : vector<1x1x128x128xf32> to vector<128x128xf32>
    %8 = vector.broadcast %5 : f32 to vector<128x128xf32>
    %9 = arith.mulf %8, %7 : vector<128x128xf32>
    %c2 = arith.constant 2 : index
    %10 = memref.load %arg3[%c2] : memref<16xf32, #tpu.memory_space<smem>>
    %c0_8 = arith.constant 0 : index
    %c2_9 = arith.constant 2 : index
    %c0_10 = arith.constant 0 : index
    %c0_11 = arith.constant 0 : index
    %11 = vector.load %arg4[%c0_8, %c2_9, %c0_10, %c0_11] : memref<1x4x128x128xf32, #tpu.memory_space<vmem>>, vector<1x1x128x128xf32>
    %12 = vector.shape_cast %11 : vector<1x1x128x128xf32> to vector<128x128xf32>
    %13 = vector.broadcast %10 : f32 to vector<128x128xf32>
    %14 = arith.mulf %13, %12 : vector<128x128xf32>
    %c3 = arith.constant 3 : index
    %15 = memref.load %arg3[%c3] : memref<16xf32, #tpu.memory_space<smem>>
    %c0_12 = arith.constant 0 : index
    %c3_13 = arith.constant 3 : index
    %c0_14 = arith.constant 0 : index
    %c0_15 = arith.constant 0 : index
    %16 = vector.load %arg4[%c0_12, %c3_13, %c0_14, %c0_15] : memref<1x4x128x128xf32, #tpu.memory_space<vmem>>, vector<1x1x128x128xf32>
    %17 = vector.shape_cast %16 : vector<1x1x128x128xf32> to vector<128x128xf32>
    %18 = vector.broadcast %15 : f32 to vector<128x128xf32>
    %19 = arith.mulf %18, %17 : vector<128x128xf32>
    %20 = arith.addf %4, %9 : vector<128x128xf32>
    %21 = arith.addf %14, %19 : vector<128x128xf32>
    %22 = arith.addf %20, %21 : vector<128x128xf32>
    %23 = arith.truncf %22 : vector<128x128xf32> to vector<128x128xbf16>
    %c0_16 = arith.constant 0 : index
    %c0_17 = arith.constant 0 : index
    %c0_18 = arith.constant 0 : index
    %c0_19 = arith.constant 0 : index
    %24 = vector.load %arg5[%c0_16, %c0_17, %c0_18, %c0_19] : memref<1x2x128x128xbf16, #tpu.memory_space<vmem>>, vector<1x1x128x128xbf16>
    %25 = vector.shape_cast %24 : vector<1x1x128x128xbf16> to vector<128x128xbf16>
    %26 = vector.shape_cast %23 : vector<128x128xbf16> to vector<1x1x128x128xbf16>
    tpu.vector_store %arg5[%c0_16, %c0_17, %c0_18, %c0_19], %26 {strides = array<i32>} : memref<1x2x128x128xbf16, #tpu.memory_space<vmem>>, vector<1x1x128x128xbf16>,
    %c4 = arith.constant 4 : index
    %27 = memref.load %arg3[%c4] : memref<16xf32, #tpu.memory_space<smem>>
    %c0_20 = arith.constant 0 : index
    %c0_21 = arith.constant 0 : index
    %c0_22 = arith.constant 0 : index
    %c0_23 = arith.constant 0 : index
    %28 = vector.load %arg4[%c0_20, %c0_21, %c0_22, %c0_23] : memref<1x4x128x128xf32, #tpu.memory_space<vmem>>, vector<1x1x128x128xf32>
    %29 = vector.shape_cast %28 : vector<1x1x128x128xf32> to vector<128x128xf32>
    %30 = vector.broadcast %27 : f32 to vector<128x128xf32>
    %31 = arith.mulf %30, %29 : vector<128x128xf32>
    %c5 = arith.constant 5 : index
    %32 = memref.load %arg3[%c5] : memref<16xf32, #tpu.memory_space<smem>>
    %c0_24 = arith.constant 0 : index
    %c1_25 = arith.constant 1 : index
    %c0_26 = arith.constant 0 : index
    %c0_27 = arith.constant 0 : index
    %33 = vector.load %arg4[%c0_24, %c1_25, %c0_26, %c0_27] : memref<1x4x128x128xf32, #tpu.memory_space<vmem>>, vector<1x1x128x128xf32>
    %34 = vector.shape_cast %33 : vector<1x1x128x128xf32> to vector<128x128xf32>
    %35 = vector.broadcast %32 : f32 to vector<128x128xf32>
    %36 = arith.mulf %35, %34 : vector<128x128xf32>
    %c6 = arith.constant 6 : index
    %37 = memref.load %arg3[%c6] : memref<16xf32, #tpu.memory_space<smem>>
    %c0_28 = arith.constant 0 : index
    %c2_29 = arith.constant 2 : index
    %c0_30 = arith.constant 0 : index
    %c0_31 = arith.constant 0 : index
    %38 = vector.load %arg4[%c0_28, %c2_29, %c0_30, %c0_31] : memref<1x4x128x128xf32, #tpu.memory_space<vmem>>, vector<1x1x128x128xf32>
    %39 = vector.shape_cast %38 : vector<1x1x128x128xf32> to vector<128x128xf32>
    %40 = vector.broadcast %37 : f32 to vector<128x128xf32>
    %41 = arith.mulf %40, %39 : vector<128x128xf32>
    %c7 = arith.constant 7 : index
    %42 = memref.load %arg3[%c7] : memref<16xf32, #tpu.memory_space<smem>>
    %c0_32 = arith.constant 0 : index
    %c3_33 = arith.constant 3 : index
    %c0_34 = arith.constant 0 : index
    %c0_35 = arith.constant 0 : index
    %43 = vector.load %arg4[%c0_32, %c3_33, %c0_34, %c0_35] : memref<1x4x128x128xf32, #tpu.memory_space<vmem>>, vector<1x1x128x128xf32>
    %44 = vector.shape_cast %43 : vector<1x1x128x128xf32> to vector<128x128xf32>
    %45 = vector.broadcast %42 : f32 to vector<128x128xf32>
    %46 = arith.mulf %45, %44 : vector<128x128xf32>
    %47 = arith.addf %31, %36 : vector<128x128xf32>
    %48 = arith.addf %41, %46 : vector<128x128xf32>
    %49 = arith.addf %47, %48 : vector<128x128xf32>
    %50 = arith.truncf %49 : vector<128x128xf32> to vector<128x128xbf16>
    %c0_36 = arith.constant 0 : index
    %c1_37 = arith.constant 1 : index
    %c0_38 = arith.constant 0 : index
    %c0_39 = arith.constant 0 : index
    %51 = vector.load %arg5[%c0_36, %c1_37, %c0_38, %c0_39] : memref<1x2x128x128xbf16, #tpu.memory_space<vmem>>, vector<1x1x128x128xbf16>
    %52 = vector.shape_cast %51 : vector<1x1x128x128xbf16> to vector<128x128xbf16>
    %53 = vector.shape_cast %50 : vector<128x128xbf16> to vector<1x1x128x128xbf16>
    tpu.vector_store %arg5[%c0_36, %c1_37, %c0_38, %c0_39], %53 {strides = array<i32>} : memref<1x2x128x128xbf16, #tpu.memory_space<vmem>>, vector<1x1x128x128xbf16>,
    %c8 = arith.constant 8 : index
    %54 = memref.load %arg3[%c8] : memref<16xf32, #tpu.memory_space<smem>>
    %c0_40 = arith.constant 0 : index
    %c0_41 = arith.constant 0 : index
    %c0_42 = arith.constant 0 : index
    %c0_43 = arith.constant 0 : index
    %55 = vector.load %arg4[%c0_40, %c0_41, %c0_42, %c0_43] : memref<1x4x128x128xf32, #tpu.memory_space<vmem>>, vector<1x1x128x128xf32>
    %56 = vector.shape_cast %55 : vector<1x1x128x128xf32> to vector<128x128xf32>
    %57 = vector.broadcast %54 : f32 to vector<128x128xf32>
    %58 = arith.mulf %57, %56 : vector<128x128xf32>
    %c9 = arith.constant 9 : index
    %59 = memref.load %arg3[%c9] : memref<16xf32, #tpu.memory_space<smem>>
    %c0_44 = arith.constant 0 : index
    %c1_45 = arith.constant 1 : index
    %c0_46 = arith.constant 0 : index
    %c0_47 = arith.constant 0 : index
    %60 = vector.load %arg4[%c0_44, %c1_45, %c0_46, %c0_47] : memref<1x4x128x128xf32, #tpu.memory_space<vmem>>, vector<1x1x128x128xf32>
    %61 = vector.shape_cast %60 : vector<1x1x128x128xf32> to vector<128x128xf32>
    %62 = vector.broadcast %59 : f32 to vector<128x128xf32>
    %63 = arith.mulf %62, %61 : vector<128x128xf32>
    %c10 = arith.constant 10 : index
    %64 = memref.load %arg3[%c10] : memref<16xf32, #tpu.memory_space<smem>>
    %c0_48 = arith.constant 0 : index
    %c2_49 = arith.constant 2 : index
    %c0_50 = arith.constant 0 : index
    %c0_51 = arith.constant 0 : index
    %65 = vector.load %arg4[%c0_48, %c2_49, %c0_50, %c0_51] : memref<1x4x128x128xf32, #tpu.memory_space<vmem>>, vector<1x1x128x128xf32>
    %66 = vector.shape_cast %65 : vector<1x1x128x128xf32> to vector<128x128xf32>
    %67 = vector.broadcast %64 : f32 to vector<128x128xf32>
    %68 = arith.mulf %67, %66 : vector<128x128xf32>
    %c11 = arith.constant 11 : index
    %69 = memref.load %arg3[%c11] : memref<16xf32, #tpu.memory_space<smem>>
    %c0_52 = arith.constant 0 : index
    %c3_53 = arith.constant 3 : index
    %c0_54 = arith.constant 0 : index
    %c0_55 = arith.constant 0 : index
    %70 = vector.load %arg4[%c0_52, %c3_53, %c0_54, %c0_55] : memref<1x4x128x128xf32, #tpu.memory_space<vmem>>, vector<1x1x128x128xf32>
    %71 = vector.shape_cast %70 : vector<1x1x128x128xf32> to vector<128x128xf32>
    %72 = vector.broadcast %69 : f32 to vector<128x128xf32>
    %73 = arith.mulf %72, %71 : vector<128x128xf32>
    %74 = arith.addf %58, %63 : vector<128x128xf32>
    %75 = arith.addf %68, %73 : vector<128x128xf32>
    %76 = arith.addf %74, %75 : vector<128x128xf32>
    %77 = arith.truncf %76 : vector<128x128xf32> to vector<128x128xbf16>
    %c0_56 = arith.constant 0 : index
    %c0_57 = arith.constant 0 : index
    %c0_58 = arith.constant 0 : index
    %c0_59 = arith.constant 0 : index
    %78 = vector.load %arg6[%c0_56, %c0_57, %c0_58, %c0_59] : memref<1x2x128x128xbf16, #tpu.memory_space<vmem>>, vector<1x1x128x128xbf16>
    %79 = vector.shape_cast %78 : vector<1x1x128x128xbf16> to vector<128x128xbf16>
    %80 = vector.shape_cast %77 : vector<128x128xbf16> to vector<1x1x128x128xbf16>
    tpu.vector_store %arg6[%c0_56, %c0_57, %c0_58, %c0_59], %80 {strides = array<i32>} : memref<1x2x128x128xbf16, #tpu.memory_space<vmem>>, vector<1x1x128x128xbf16>,
    %c12 = arith.constant 12 : index
    %81 = memref.load %arg3[%c12] : memref<16xf32, #tpu.memory_space<smem>>
    %c0_60 = arith.constant 0 : index
    %c0_61 = arith.constant 0 : index
    %c0_62 = arith.constant 0 : index
    %c0_63 = arith.constant 0 : index
    %82 = vector.load %arg4[%c0_60, %c0_61, %c0_62, %c0_63] : memref<1x4x128x128xf32, #tpu.memory_space<vmem>>, vector<1x1x128x128xf32>
    %83 = vector.shape_cast %82 : vector<1x1x128x128xf32> to vector<128x128xf32>
    %84 = vector.broadcast %81 : f32 to vector<128x128xf32>
    %85 = arith.mulf %84, %83 : vector<128x128xf32>
    %c13 = arith.constant 13 : index
    %86 = memref.load %arg3[%c13] : memref<16xf32, #tpu.memory_space<smem>>
    %c0_64 = arith.constant 0 : index
    %c1_65 = arith.constant 1 : index
    %c0_66 = arith.constant 0 : index
    %c0_67 = arith.constant 0 : index
    %87 = vector.load %arg4[%c0_64, %c1_65, %c0_66, %c0_67] : memref<1x4x128x128xf32, #tpu.memory_space<vmem>>, vector<1x1x128x128xf32>
    %88 = vector.shape_cast %87 : vector<1x1x128x128xf32> to vector<128x128xf32>
    %89 = vector.broadcast %86 : f32 to vector<128x128xf32>
    %90 = arith.mulf %89, %88 : vector<128x128xf32>
    %c14 = arith.constant 14 : index
    %91 = memref.load %arg3[%c14] : memref<16xf32, #tpu.memory_space<smem>>
    %c0_68 = arith.constant 0 : index
    %c2_69 = arith.constant 2 : index
    %c0_70 = arith.constant 0 : index
    %c0_71 = arith.constant 0 : index
    %92 = vector.load %arg4[%c0_68, %c2_69, %c0_70, %c0_71] : memref<1x4x128x128xf32, #tpu.memory_space<vmem>>, vector<1x1x128x128xf32>
    %93 = vector.shape_cast %92 : vector<1x1x128x128xf32> to vector<128x128xf32>
    %94 = vector.broadcast %91 : f32 to vector<128x128xf32>
    %95 = arith.mulf %94, %93 : vector<128x128xf32>
    %c15 = arith.constant 15 : index
    %96 = memref.load %arg3[%c15] : memref<16xf32, #tpu.memory_space<smem>>
    %c0_72 = arith.constant 0 : index
    %c3_73 = arith.constant 3 : index
    %c0_74 = arith.constant 0 : index
    %c0_75 = arith.constant 0 : index
    %97 = vector.load %arg4[%c0_72, %c3_73, %c0_74, %c0_75] : memref<1x4x128x128xf32, #tpu.memory_space<vmem>>, vector<1x1x128x128xf32>
    %98 = vector.shape_cast %97 : vector<1x1x128x128xf32> to vector<128x128xf32>
    %99 = vector.broadcast %96 : f32 to vector<128x128xf32>
    %100 = arith.mulf %99, %98 : vector<128x128xf32>
    %101 = arith.addf %85, %90 : vector<128x128xf32>
    %102 = arith.addf %95, %100 : vector<128x128xf32>
    %103 = arith.addf %101, %102 : vector<128x128xf32>
    %104 = arith.truncf %103 : vector<128x128xf32> to vector<128x128xbf16>
    %c0_76 = arith.constant 0 : index
    %c1_77 = arith.constant 1 : index
    %c0_78 = arith.constant 0 : index
    %c0_79 = arith.constant 0 : index
    %105 = vector.load %arg6[%c0_76, %c1_77, %c0_78, %c0_79] : memref<1x2x128x128xbf16, #tpu.memory_space<vmem>>, vector<1x1x128x128xbf16>
    %106 = vector.shape_cast %105 : vector<1x1x128x128xbf16> to vector<128x128xbf16>
    %107 = vector.shape_cast %104 : vector<128x128xbf16> to vector<1x1x128x128xbf16>
    tpu.vector_store %arg6[%c0_76, %c1_77, %c0_78, %c0_79], %107 {strides = array<i32>} : memref<1x2x128x128xbf16, #tpu.memory_space<vmem>>, vector<1x1x128x128xbf16>,
    return
  }
  func.func @transform_0(%arg0: i32, %arg1: i32, %arg2: i32) -> i32 {
    %c0_i32 = arith.constant 0 : i32
    %c0_i32_0 = arith.constant 0 : i32
    return %c0_i32 : i32
  }
  func.func @transform_1(%arg0: i32, %arg1: i32, %arg2: i32) -> (i32, i32, i32, i32) {
    %c0_i32 = arith.constant 0 : i32
    %c0_i32_0 = arith.constant 0 : i32
    return %arg0, %c0_i32, %arg1, %arg2 : i32, i32, i32, i32
  }
  func.func @transform_2(%arg0: i32, %arg1: i32, %arg2: i32) -> (i32, i32, i32, i32) {
    %c0_i32 = arith.constant 0 : i32
    %c0_i32_0 = arith.constant 0 : i32
    return %arg0, %c0_i32, %arg1, %arg2 : i32, i32, i32, i32
  }
  func.func @transform_3(%arg0: i32, %arg1: i32, %arg2: i32) -> (i32, i32, i32, i32) {
    %c0_i32 = arith.constant 0 : i32
    %c0_i32_0 = arith.constant 0 : i32
    return %arg0, %c0_i32, %arg1, %arg2 : i32, i32, i32, i32
  }
}

</mosaic_0001>

<llo_original>
// kernel: tpu_custom_call.1
$region0: #{tpu_custom_call.1}
  #allocation0 [shape = 'u32[]', space=smem, size = 0x4, offset = 0x4, fixed_abs, tag = 'smem constant byte address 0x4 - core index']
  #allocation1 [shape = 'u32[144,128]{1,0:T(1,128)}', space=vmem, size = 0x12000, scoped, tag = 'internal scratch']
  %s0 = inlined_call_operand.hbm [shape: f32[16], index: 0, kind: input, shape index: {}]
  %s1 = inlined_call_operand.hbm [shape: f32[2,4,128,128], index: 1, kind: input, shape index: {}]
  %s2 = inlined_call_operand.hbm [shape: bf16[2,2,128,128], index: 2, kind: output, shape index: {0}]
  %s3 = inlined_call_operand.hbm [shape: bf16[2,2,128,128], index: 3, kind: output, shape index: {1}]
  %4 = xla_tuple %s2, %s3
  %s5 = sld [smem:[#allocation0]]
  $region57: #{tpu_custom_call.1} parent=0
    _
  %s7 = ssub.s32 1, %s5
  %s8 = scalar_select 0, %s7, %s5
  $region1: #{tpu_custom_call.1} parent=0
    #allocation2 [shape = 'u8[512]{0}', space=smem, size = 0x200, scoped, tag = 'input window, operand 0, single buffered']
    #allocation3 [shape = 's32[2]{0}', space=sflag, size = 0x8, scoped, tag = 'scoped memory for tpu_custom_call.1']
    #allocation4 [shape = 's32[2]{0}', space=sflag, size = 0x8, scoped, tag = 'scoped memory for tpu_custom_call.1']
    #allocation5 [shape = 's32[2]{0}', space=sflag, size = 0x8, scoped, tag = 'scoped memory for tpu_custom_call.1']
    #allocation6 [shape = 'u8[524288]{0}', space=vmem, size = 0x80000, scoped, tag = 'input window, operand 1']
    #allocation7 [shape = 'u8[131072]{0}', space=vmem, size = 0x20000, scoped, tag = 'output window, operand 0']
    #allocation8 [shape = 'u8[131072]{0}', space=vmem, size = 0x20000, scoped, tag = 'output window, operand 1']
    #allocation9 [shape = 's32[2]{0}', space=sflag, size = 0x8, scoped, tag = 'scoped memory for tpu_custom_call.1']
    %9 = vsyncpa [#allocation5], 0
    %10 = vsyncpa [#allocation3], 0
    %s11 = scalar_lea.sflag [#allocation3], 1
    %12 = vsyncpa %s11, 0
    %13 = vsyncpa [#allocation4], 0
    %s14 = scalar_lea.sflag [#allocation4], 1
    %15 = vsyncpa %s14, 0
    %16 = vsyncpa [#allocation9], 0
    %s17 = scalar_lea.sflag [#allocation9], 1
    %18 = vsyncpa %s17, 0
    loop: start=0, step=1, limit=4
    $region2: #{tpu_custom_call.1} parent=1 // loop_pre_header
      _
    $region3: #{tpu_custom_call.1} parent=1 // loop_header
      %s20 = sphi 0, %s24
      %p21 = scmp.ge.s32.totalorder %s20, 4
      %s27 = sphi 0, %s46
      %s28 = sphi 0, %s42
      %s29 = sphi 0, %s38
      %s30 = sphi 0, %s27
      %s31 = sphi 0, %s28
      %s32 = sphi 0, %s29
      %s33 = sphi 0, %s30
      %s34 = sphi 0, %s31
      %s35 = sphi 0, %s32
      %s47 = sphi 0, %s47
      %s49 = sphi 0, %s47
      %s50 = sphi 0, %s49
      %s64 = sphi 0, %s50
      %s74 = sphi 0, %s76
      %s77 = sphi 0, %s74
      %s78 = sphi 0, %s77
      %s94 = sphi 0, %s78
      %s104 = sphi 0, %s106
      %s107 = sphi 0, %s104
      %s108 = sphi 0, %s107
      %s124 = sphi 0, %s108
      %s134 = sphi 0, %s136
      %s137 = sphi 0, %s134
      %s138 = sphi 0, %s137
      %s154 = sphi 0, %s138
    $region4: #{tpu_custom_call.1} parent=1 // loop_header_branch
      %23 = sbr.rel (%p21) target = $region8
    $region5: #{tpu_custom_call.1} parent=1 // loop_body
      %s25 = ssub.s32 %s20, 1
      %s26 = ssub.s32 %s20, 2
      %s36 = sadd.s32 1, %s29
      %p37 = scmp.ge.s32.totalorder %s36, 1
      %s38 = scalar_select %p37, 0, %s36
      %s39 = sadd.s32 1, %s28
      %s40 = scalar_select %p37, %s39, %s28
      %p41 = scmp.ge.s32.totalorder %s40, 1
      %s42 = scalar_select %p41, 0, %s40
      %s43 = sadd.s32 1, %s27
      %s44 = scalar_select %p41, %s43, %s27
      %p45 = scmp.ge.s32.totalorder %s44, 2
      %s46 = scalar_select %p45, 0, %s44
      %s48 = sadd.s32 %s47, 1
      %p51 = scmp.eq.s32.totalorder %s20, 1
      %p52 = scmp.ne.s32.totalorder %s47, %s49
      %p53 = scmp.eq.s32.totalorder %s20, 0
      %p54 = por %p52, %p53
      %p55 = scmp.ne.s32.totalorder %s47, %s49
      %p56 = scmp.eq.s32.totalorder %s25, 1
      %p57 = por %p55, %p56
      %p58 = scmp.ne.s32.totalorder %s49, %s50
      %p59 = scmp.eq.s32.totalorder %s25, 0
      %p60 = por %p58, %p59
      %p61 = scmp.ne.s32.totalorder %s49, %s50
      %p62 = scmp.eq.s32.totalorder %s26, 1
      %p63 = por %p61, %p62
      %p65 = scmp.ne.s32.totalorder %s50, %s64
      %p66 = scmp.eq.s32.totalorder %s26, 0
      %p67 = por %p65, %p66
      %s68 = ssub.s32 %s27, %s46
      %s69 = ssub.s32 %s28, %s42
      %s70 = sor.u32 %s68, %s69
      %s71 = ssub.s32 %s29, %s38
      %s72 = sor.u32 %s70, %s71
      %p73 = scmp.eq.s32.totalorder %s72, 0
      %s75 = sadd.s32 %s74, 1
      %s76 = scalar_select %p73, %s74, %s75
      %p79 = pneg %p73
      %p80 = scmp.eq.s32.totalorder %s20, 1
      %p81 = por %p79, %p80
      %p82 = scmp.ne.s32.totalorder %s74, %s77
      %p83 = scmp.eq.s32.totalorder %s20, 0
      %p84 = por %p82, %p83
      %p85 = scmp.ne.s32.totalorder %s74, %s77
      %p86 = scmp.eq.s32.totalorder %s25, 1
      %p87 = por %p85, %p86
      %p88 = scmp.ne.s32.totalorder %s77, %s78
      %p89 = scmp.eq.s32.totalorder %s25, 0
      %p90 = por %p88, %p89
      %p91 = scmp.ne.s32.totalorder %s77, %s78
      %p92 = scmp.eq.s32.totalorder %s26, 1
      %p93 = por %p91, %p92
      %p95 = scmp.ne.s32.totalorder %s78, %s94
      %p96 = scmp.eq.s32.totalorder %s26, 0
      %p97 = por %p95, %p96
      %s98 = ssub.s32 %s27, %s46
      %s99 = ssub.s32 %s28, %s42
      %s100 = sor.u32 %s98, %s99
      %s101 = ssub.s32 %s29, %s38
      %s102 = sor.u32 %s100, %s101
      %p103 = scmp.eq.s32.totalorder %s102, 0
      %s105 = sadd.s32 %s104, 1
      %s106 = scalar_select %p103, %s104, %s105
      %p109 = pneg %p103
      %p110 = scmp.eq.s32.totalorder %s20, 1
      %p111 = por %p109, %p110
      %p112 = scmp.ne.s32.totalorder %s104, %s107
      %p113 = scmp.eq.s32.totalorder %s20, 0
      %p114 = por %p112, %p113
      %p115 = scmp.ne.s32.totalorder %s104, %s107
      %p116 = scmp.eq.s32.totalorder %s25, 1
      %p117 = por %p115, %p116
      %p118 = scmp.ne.s32.totalorder %s107, %s108
      %p119 = scmp.eq.s32.totalorder %s25, 0
      %p120 = por %p118, %p119
      %p121 = scmp.ne.s32.totalorder %s107, %s108
      %p122 = scmp.eq.s32.totalorder %s26, 1
      %p123 = por %p121, %p122
      %p125 = scmp.ne.s32.totalorder %s108, %s124
      %p126 = scmp.eq.s32.totalorder %s26, 0
      %p127 = por %p125, %p126
      %s128 = ssub.s32 %s27, %s46
      %s129 = ssub.s32 %s28, %s42
      %s130 = sor.u32 %s128, %s129
      %s131 = ssub.s32 %s29, %s38
      %s132 = sor.u32 %s130, %s131
      %p133 = scmp.eq.s32.totalorder %s132, 0
      %s135 = sadd.s32 %s134, 1
      %s136 = scalar_select %p133, %s134, %s135
      %p139 = pneg %p133
      %p140 = scmp.eq.s32.totalorder %s20, 1
      %p141 = por %p139, %p140
      %p142 = scmp.ne.s32.totalorder %s134, %s137
      %p143 = scmp.eq.s32.totalorder %s20, 0
      %p144 = por %p142, %p143
      %p145 = scmp.ne.s32.totalorder %s134, %s137
      %p146 = scmp.eq.s32.totalorder %s25, 1
      %p147 = por %p145, %p146
      %p148 = scmp.ne.s32.totalorder %s137, %s138
      %p149 = scmp.eq.s32.totalorder %s25, 0
      %p150 = por %p148, %p149
      %p151 = scmp.ne.s32.totalorder %s137, %s138
      %p152 = scmp.eq.s32.totalorder %s26, 1
      %p153 = por %p151, %p152
      %p155 = scmp.ne.s32.totalorder %s138, %s154
      %p156 = scmp.eq.s32.totalorder %s26, 0
      %p157 = por %p155, %p156
      %p158 = scmp.le.s32.totalorder 1, %s20
      %p159 = scmp.lt.s32.totalorder %s20, 3
      %p160 = pnand %p158, %p159
      %p161 = pneg %p160
      // Predicated region
      $region9: #{tpu_custom_call.1} parent=5 // pred_check
        _
      $region10: #{tpu_custom_call.1} parent=5 // pred_check_branch
        %163 = sbr.rel (%p160) target = $region12
      $region11: #{tpu_custom_call.1} parent=5 // pred_region
        %s164 = ssub.s32 %s20, 1
        // Predicated region
        $region13: #{tpu_custom_call.1} parent=11 // pred_check
          %p165 = pneg %p60
        $region14: #{tpu_custom_call.1} parent=11 // pred_check_branch
          %167 = sbr.rel (%p165) target = $region16
        $region15: #{tpu_custom_call.1} parent=11 // pred_region
          %s169 = ssub.s32 16, 16
          %170 = vsyncadd [#allocation5], %s169
          %173 = dma.hbm_to_smem %s0, 16, [#allocation2], [#allocation5]
        $region16: #{tpu_custom_call.1} parent=11 // pred_fallthru
          _
      $region12: #{tpu_custom_call.1} parent=5 // pred_fallthru
        _
      %p174 = scmp.lt.s32.totalorder %s20, 2
      // Predicated region
      $region17: #{tpu_custom_call.1} parent=5 // pred_check
        %p175 = pneg %p174
      $region18: #{tpu_custom_call.1} parent=5 // pred_check_branch
        %177 = sbr.rel (%p175) target = $region20
      $region19: #{tpu_custom_call.1} parent=5 // pred_region
        // Predicated region
        $region21: #{tpu_custom_call.1} parent=19 // pred_check
          %p178 = pneg %p84
        $region22: #{tpu_custom_call.1} parent=19 // pred_check_branch
          %180 = sbr.rel (%p178) target = $region24
        $region23: #{tpu_custom_call.1} parent=19 // pred_region
          %s181 = sand.u32 %s74, 1
          %s182 = scalar_lea.sflag [#allocation3], %s181
          %s183 = sand.u32 %s74, 1
          %s184 = smul.addr %s183, 512
          %s185 = scalar_lea.vmem [#allocation6], %s184
          %s186 = smul.u32 16, %s28
          %s188 = ssub.s32 8192, 8192
          %189 = vsyncadd %s182, %s188
          %s190 = sadd.s32 %s29, %s186
          %s191 = smul.addr %s27, 64
          %s192 = sadd.s32 %s190, %s191
          %s193 = smul.addr %s192, 128
          %s194 = scalar_lea.hbm %s1, %s193
          %s195 = sshll.u32 %s185, 4
          %s196 = int_to_ptr.vmem [resolvable:$true] %s195
          %201 = dma.hbm_to_vmem [thread:$0]  %s194, 8192, %s196, %s182, 128, 128, 8
        $region24: #{tpu_custom_call.1} parent=19 // pred_fallthru
          _
      $region20: #{tpu_custom_call.1} parent=5 // pred_fallthru
        _
      %p202 = scmp.le.s32.totalorder 1, %s20
      %p203 = scmp.lt.s32.totalorder %s20, 3
      %p204 = pnand %p202, %p203
      %p205 = pneg %p204
      // Predicated region
      $region25: #{tpu_custom_call.1} parent=5 // pred_check
        _
      $region26: #{tpu_custom_call.1} parent=5 // pred_check_branch
        %207 = sbr.rel (%p204) target = $region28
      $region27: #{tpu_custom_call.1} parent=5 // pred_region
        %s208 = ssub.s32 %s20, 1
        // Predicated region
        $region29: #{tpu_custom_call.1} parent=27 // pred_check
          %p209 = pneg %p60
        $region30: #{tpu_custom_call.1} parent=27 // pred_check_branch
          %211 = sbr.rel (%p209) target = $region32
        $region31: #{tpu_custom_call.1} parent=27 // pred_region
          %212 = dma.done [#allocation5], 16
        $region32: #{tpu_custom_call.1} parent=27 // pred_fallthru
          _
        %s213 = sand.u32 %s77, 1
        %s214 = scalar_lea.sflag [#allocation3], %s213
        %s215 = sand.u32 %s77, 1
        %s216 = smul.addr %s215, 512
        %s217 = scalar_lea.vmem [#allocation6], %s216
        // Predicated region
        $region33: #{tpu_custom_call.1} parent=27 // pred_check
          %p218 = pneg %p90
        $region34: #{tpu_custom_call.1} parent=27 // pred_check_branch
          %220 = sbr.rel (%p218) target = $region36
        $region35: #{tpu_custom_call.1} parent=27 // pred_region
          %221 = dma.done %s214, 8192
        $region36: #{tpu_custom_call.1} parent=27 // pred_fallthru
          _
        %222 = sfence
        %p223 = pneg %p60
        %p224 = pneg %p57
        %s225 = sand.u32 %s77, 1
        %s226 = scalar_lea.sflag [#allocation3], %s225
        %s227 = sand.u32 %s77, 1
        %s228 = smul.addr %s227, 512
        %s229 = scalar_lea.vmem [#allocation6], %s228
        %p230 = pneg %p90
        %p231 = pneg %p87
        %p232 = pneg %p120
        %p233 = pneg %p117
        %s234 = sand.u32 %s107, 1
        %s235 = scalar_lea.sflag [#allocation4], %s234
        %s236 = sand.u32 %s107, 1
        %s237 = smul.addr %s236, 128
        %s238 = scalar_lea.vmem [#allocation7], %s237
        %p239 = pneg %p150
        %p240 = pneg %p147
        %s241 = sand.u32 %s137, 1
        %s242 = scalar_lea.sflag [#allocation9], %s241
        %s243 = sand.u32 %s137, 1
        %s244 = smul.addr %s243, 128
        %s245 = scalar_lea.vmem [#allocation8], %s244
        %s246 = smul.u32 16, %s31
        %s247 = smul.u32 16, %s31
        %s248 = smul.u32 16, %s31
        %s249 = sld [smem:[#allocation2]]
        %v250 = vld [vmem:[%s217] sm:$0xff]
        %v251 = vld [vmem:[%s217 + $0x8] sm:$0xff]
        %v252 = vld [vmem:[%s217 + $0x10] sm:$0xff]
        %v253 = vld [vmem:[%s217 + $0x18] sm:$0xff]
        %v254 = vld [vmem:[%s217 + $0x20] sm:$0xff]
        %v255 = vld [vmem:[%s217 + $0x28] sm:$0xff]
        %v256 = vld [vmem:[%s217 + $0x30] sm:$0xff]
        %v257 = vld [vmem:[%s217 + $0x38] sm:$0xff]
        %v258 = vld [vmem:[%s217 + $0x40] sm:$0xff]
        %v259 = vld [vmem:[%s217 + $0x48] sm:$0xff]
        %v260 = vld [vmem:[%s217 + $0x50] sm:$0xff]
        %v261 = vld [vmem:[%s217 + $0x58] sm:$0xff]
        %v262 = vld [vmem:[%s217 + $0x60] sm:$0xff]
        %v263 = vld [vmem:[%s217 + $0x68] sm:$0xff]
        %v264 = vld [vmem:[%s217 + $0x70] sm:$0xff]
        %v265 = vld [vmem:[%s217 + $0x78] sm:$0xff]
        %v266 = vstv %s249
        %v267 = vmul.f32 %v266, %v250
        %v268 = vmul.f32 %v266, %v251
        %v269 = vmul.f32 %v266, %v252
        %v270 = vmul.f32 %v266, %v253
        %v271 = vmul.f32 %v266, %v254
        %v272 = vmul.f32 %v266, %v255
        %v273 = vmul.f32 %v266, %v256
        %v274 = vmul.f32 %v266, %v257
        %v275 = vmul.f32 %v266, %v258
        %v276 = vmul.f32 %v266, %v259
        %v277 = vmul.f32 %v266, %v260
        %v278 = vmul.f32 %v266, %v261
        %v279 = vmul.f32 %v266, %v262
        %v280 = vmul.f32 %v266, %v263
        %v281 = vmul.f32 %v266, %v264
        %v282 = vmul.f32 %v266, %v265
        %s283 = sld [smem:[#allocation2 + $0x1]]
        %s284 = scalar_lea.vmem %s217, 128 [#allocation6]
        %v285 = vld [vmem:[%s284] sm:$0xff]
        %v286 = vld [vmem:[%s284 + $0x8] sm:$0xff]
        %v287 = vld [vmem:[%s284 + $0x10] sm:$0xff]
        %v288 = vld [vmem:[%s284 + $0x18] sm:$0xff]
        %v289 = vld [vmem:[%s284 + $0x20] sm:$0xff]
        %v290 = vld [vmem:[%s284 + $0x28] sm:$0xff]
        %v291 = vld [vmem:[%s284 + $0x30] sm:$0xff]
        %v292 = vld [vmem:[%s284 + $0x38] sm:$0xff]
        %v293 = vld [vmem:[%s284 + $0x40] sm:$0xff]
        %v294 = vld [vmem:[%s284 + $0x48] sm:$0xff]
        %v295 = vld [vmem:[%s284 + $0x50] sm:$0xff]
        %v296 = vld [vmem:[%s284 + $0x58] sm:$0xff]
        %v297 = vld [vmem:[%s284 + $0x60] sm:$0xff]
        %v298 = vld [vmem:[%s284 + $0x68] sm:$0xff]
        %v299 = vld [vmem:[%s284 + $0x70] sm:$0xff]
        %v300 = vld [vmem:[%s284 + $0x78] sm:$0xff]
        %v301 = vstv %s283
        %v302 = vmul.f32 %v301, %v285
        %v303 = vmul.f32 %v301, %v286
        %v304 = vmul.f32 %v301, %v287
        %v305 = vmul.f32 %v301, %v288
        %v306 = vmul.f32 %v301, %v289
        %v307 = vmul.f32 %v301, %v290
        %v308 = vmul.f32 %v301, %v291
        %v309 = vmul.f32 %v301, %v292
        %v310 = vmul.f32 %v301, %v293
        %v311 = vmul.f32 %v301, %v294
        %v312 = vmul.f32 %v301, %v295
        %v313 = vmul.f32 %v301, %v296
        %v314 = vmul.f32 %v301, %v297
        %v315 = vmul.f32 %v301, %v298
        %v316 = vmul.f32 %v301, %v299
        %v317 = vmul.f32 %v301, %v300
        %s318 = sld [smem:[#allocation2 + $0x2]]
        %s319 = scalar_lea.vmem %s217, 256 [#allocation6]
        %v320 = vld [vmem:[%s319] sm:$0xff]
        %v321 = vld [vmem:[%s319 + $0x8] sm:$0xff]
        %v322 = vld [vmem:[%s319 + $0x10] sm:$0xff]
        %v323 = vld [vmem:[%s319 + $0x18] sm:$0xff]
        %v324 = vld [vmem:[%s319 + $0x20] sm:$0xff]
        %v325 = vld [vmem:[%s319 + $0x28] sm:$0xff]
        %v326 = vld [vmem:[%s319 + $0x30] sm:$0xff]
        %v327 = vld [vmem:[%s319 + $0x38] sm:$0xff]
        %v328 = vld [vmem:[%s319 + $0x40] sm:$0xff]
        %v329 = vld [vmem:[%s319 + $0x48] sm:$0xff]
        %v330 = vld [vmem:[%s319 + $0x50] sm:$0xff]
        %v331 = vld [vmem:[%s319 + $0x58] sm:$0xff]
        %v332 = vld [vmem:[%s319 + $0x60] sm:$0xff]
        %v333 = vld [vmem:[%s319 + $0x68] sm:$0xff]
        %v334 = vld [vmem:[%s319 + $0x70] sm:$0xff]
        %v335 = vld [vmem:[%s319 + $0x78] sm:$0xff]
        %v336 = vstv %s318
        %v337 = vmul.f32 %v336, %v320
        %v338 = vmul.f32 %v336, %v321
        %v339 = vmul.f32 %v336, %v322
        %v340 = vmul.f32 %v336, %v323
        %v341 = vmul.f32 %v336, %v324
        %v342 = vmul.f32 %v336, %v325
        %v343 = vmul.f32 %v336, %v326
        %v344 = vmul.f32 %v336, %v327
        %v345 = vmul.f32 %v336, %v328
        %v346 = vmul.f32 %v336, %v329
        %v347 = vmul.f32 %v336, %v330
        %v348 = vmul.f32 %v336, %v331
        %v349 = vmul.f32 %v336, %v332
        %v350 = vmul.f32 %v336, %v333
        %v351 = vmul.f32 %v336, %v334
        %v352 = vmul.f32 %v336, %v335
        %s353 = sld [smem:[#allocation2 + $0x3]]
        %s354 = scalar_lea.vmem %s217, 384 [#allocation6]
        %v355 = vld [vmem:[%s354] sm:$0xff]
        %v356 = vld [vmem:[%s354 + $0x8] sm:$0xff]
        %v357 = vld [vmem:[%s354 + $0x10] sm:$0xff]
        %v358 = vld [vmem:[%s354 + $0x18] sm:$0xff]
        %v359 = vld [vmem:[%s354 + $0x20] sm:$0xff]
        %v360 = vld [vmem:[%s354 + $0x28] sm:$0xff]
        %v361 = vld [vmem:[%s354 + $0x30] sm:$0xff]
        %v362 = vld [vmem:[%s354 + $0x38] sm:$0xff]
        %v363 = vld [vmem:[%s354 + $0x40] sm:$0xff]
        %v364 = vld [vmem:[%s354 + $0x48] sm:$0xff]
        %v365 = vld [vmem:[%s354 + $0x50] sm:$0xff]
        %v366 = vld [vmem:[%s354 + $0x58] sm:$0xff]
        %v367 = vld [vmem:[%s354 + $0x60] sm:$0xff]
        %v368 = vld [vmem:[%s354 + $0x68] sm:$0xff]
        %v369 = vld [vmem:[%s354 + $0x70] sm:$0xff]
        %v370 = vld [vmem:[%s354 + $0x78] sm:$0xff]
        %v371 = vstv %s353
        %v372 = vmul.f32 %v371, %v355
        %v373 = vmul.f32 %v371, %v356
        %v374 = vmul.f32 %v371, %v357
        %v375 = vmul.f32 %v371, %v358
        %v376 = vmul.f32 %v371, %v359
        %v377 = vmul.f32 %v371, %v360
        %v378 = vmul.f32 %v371, %v361
        %v379 = vmul.f32 %v371, %v362
        %v380 = vmul.f32 %v371, %v363
        %v381 = vmul.f32 %v371, %v364
        %v382 = vmul.f32 %v371, %v365
        %v383 = vmul.f32 %v371, %v366
        %v384 = vmul.f32 %v371, %v367
        %v385 = vmul.f32 %v371, %v368
        %v386 = vmul.f32 %v371, %v369
        %v387 = vmul.f32 %v371, %v370
        %v388 = vadd.f32 %v267, %v302
        %v389 = vadd.f32 %v268, %v303
        %v390 = vadd.f32 %v269, %v304
        %v391 = vadd.f32 %v270, %v305
        %v392 = vadd.f32 %v271, %v306
        %v393 = vadd.f32 %v272, %v307
        %v394 = vadd.f32 %v273, %v308
        %v395 = vadd.f32 %v274, %v309
        %v396 = vadd.f32 %v275, %v310
        %v397 = vadd.f32 %v276, %v311
        %v398 = vadd.f32 %v277, %v312
        %v399 = vadd.f32 %v278, %v313
        %v400 = vadd.f32 %v279, %v314
        %v401 = vadd.f32 %v280, %v315
        %v402 = vadd.f32 %v281, %v316
        %v403 = vadd.f32 %v282, %v317
        %v404 = vadd.f32 %v337, %v372
        %v405 = vadd.f32 %v338, %v373
        %v406 = vadd.f32 %v339, %v374
        %v407 = vadd.f32 %v340, %v375
        %v408 = vadd.f32 %v341, %v376
        %v409 = vadd.f32 %v342, %v377
        %v410 = vadd.f32 %v343, %v378
        %v411 = vadd.f32 %v344, %v379
        %v412 = vadd.f32 %v345, %v380
        %v413 = vadd.f32 %v346, %v381
        %v414 = vadd.f32 %v347, %v382
        %v415 = vadd.f32 %v348, %v383
        %v416 = vadd.f32 %v349, %v384
        %v417 = vadd.f32 %v350, %v385
        %v418 = vadd.f32 %v351, %v386
        %v419 = vadd.f32 %v352, %v387
        %v420 = vadd.f32 %v388, %v404
        %v421 = vadd.f32 %v389, %v405
        %v422 = vadd.f32 %v390, %v406
        %v423 = vadd.f32 %v391, %v407
        %v424 = vadd.f32 %v392, %v408
        %v425 = vadd.f32 %v393, %v409
        %v426 = vadd.f32 %v394, %v410
        %v427 = vadd.f32 %v395, %v411
        %v428 = vadd.f32 %v396, %v412
        %v429 = vadd.f32 %v397, %v413
        %v430 = vadd.f32 %v398, %v414
        %v431 = vadd.f32 %v399, %v415
        %v432 = vadd.f32 %v400, %v416
        %v433 = vadd.f32 %v401, %v417
        %v434 = vadd.f32 %v402, %v418
        %v435 = vadd.f32 %v403, %v419
        %v436 = vpack.c.bf16 %v421, %v420
        %v437 = vpack.c.bf16 %v423, %v422
        %v438 = vpack.c.bf16 %v425, %v424
        %v439 = vpack.c.bf16 %v427, %v426
        %v440 = vpack.c.bf16 %v429, %v428
        %v441 = vpack.c.bf16 %v431, %v430
        %v442 = vpack.c.bf16 %v433, %v432
        %v443 = vpack.c.bf16 %v435, %v434
        %v452 = vunpack.c.l.b16 %v436
        %v453 = vunpack.c.h.b16 %v436
        %v454 = vunpack.c.l.b16 %v437
        %v455 = vunpack.c.h.b16 %v437
        %v456 = vunpack.c.l.b16 %v438
        %v457 = vunpack.c.h.b16 %v438
        %v458 = vunpack.c.l.b16 %v439
        %v459 = vunpack.c.h.b16 %v439
        %v460 = vunpack.c.l.b16 %v440
        %v461 = vunpack.c.h.b16 %v440
        %v462 = vunpack.c.l.b16 %v441
        %v463 = vunpack.c.h.b16 %v441
        %v464 = vunpack.c.l.b16 %v442
        %v465 = vunpack.c.h.b16 %v442
        %v466 = vunpack.c.l.b16 %v443
        %v467 = vunpack.c.h.b16 %v443
        %v468 = vpack.c.b16 %v452, %v452
        %v469 = vpack.c.b16 %v453, %v453
        %v470 = vpack.c.b16 %v454, %v454
        %v471 = vpack.c.b16 %v455, %v455
        %v472 = vpack.c.b16 %v456, %v456
        %v473 = vpack.c.b16 %v457, %v457
        %v474 = vpack.c.b16 %v458, %v458
        %v475 = vpack.c.b16 %v459, %v459
        %v476 = vpack.c.b16 %v460, %v460
        %v477 = vpack.c.b16 %v461, %v461
        %v478 = vpack.c.b16 %v462, %v462
        %v479 = vpack.c.b16 %v463, %v463
        %v480 = vpack.c.b16 %v464, %v464
        %v481 = vpack.c.b16 %v465, %v465
        %v482 = vpack.c.b16 %v466, %v466
        %v483 = vpack.c.b16 %v467, %v467
        %500 = vst [vmem:[%s238] sm:$0xf] %v468
        %501 = vst [vmem:[%s238 + $0x4] sm:$0xf] %v469
        %502 = vst [vmem:[%s238 + $0x8] sm:$0xf] %v470
        %503 = vst [vmem:[%s238 + $0xc] sm:$0xf] %v471
        %504 = vst [vmem:[%s238 + $0x10] sm:$0xf] %v472
        %505 = vst [vmem:[%s238 + $0x14] sm:$0xf] %v473
        %506 = vst [vmem:[%s238 + $0x18] sm:$0xf] %v474
        %507 = vst [vmem:[%s238 + $0x1c] sm:$0xf] %v475
        %508 = vst [vmem:[%s238 + $0x20] sm:$0xf] %v476
        %509 = vst [vmem:[%s238 + $0x24] sm:$0xf] %v477
        %510 = vst [vmem:[%s238 + $0x28] sm:$0xf] %v478
        %511 = vst [vmem:[%s238 + $0x2c] sm:$0xf] %v479
        %512 = vst [vmem:[%s238 + $0x30] sm:$0xf] %v480
        %513 = vst [vmem:[%s238 + $0x34] sm:$0xf] %v481
        %514 = vst [vmem:[%s238 + $0x38] sm:$0xf] %v482
        %515 = vst [vmem:[%s238 + $0x3c] sm:$0xf] %v483
        %s516 = sld [smem:[#allocation2 + $0x4]]
        %v517 = vld [vmem:[%s217] sm:$0xff]
        %v518 = vld [vmem:[%s217 + $0x8] sm:$0xff]
        %v519 = vld [vmem:[%s217 + $0x10] sm:$0xff]
        %v520 = vld [vmem:[%s217 + $0x18] sm:$0xff]
        %v521 = vld [vmem:[%s217 + $0x20] sm:$0xff]
        %v522 = vld [vmem:[%s217 + $0x28] sm:$0xff]
        %v523 = vld [vmem:[%s217 + $0x30] sm:$0xff]
        %v524 = vld [vmem:[%s217 + $0x38] sm:$0xff]
        %v525 = vld [vmem:[%s217 + $0x40] sm:$0xff]
        %v526 = vld [vmem:[%s217 + $0x48] sm:$0xff]
        %v527 = vld [vmem:[%s217 + $0x50] sm:$0xff]
        %v528 = vld [vmem:[%s217 + $0x58] sm:$0xff]
        %v529 = vld [vmem:[%s217 + $0x60] sm:$0xff]
        %v530 = vld [vmem:[%s217 + $0x68] sm:$0xff]
        %v531 = vld [vmem:[%s217 + $0x70] sm:$0xff]
        %v532 = vld [vmem:[%s217 + $0x78] sm:$0xff]
        %v533 = vstv %s516
        %v534 = vmul.f32 %v533, %v517
        %v535 = vmul.f32 %v533, %v518
        %v536 = vmul.f32 %v533, %v519
        %v537 = vmul.f32 %v533, %v520
        %v538 = vmul.f32 %v533, %v521
        %v539 = vmul.f32 %v533, %v522
        %v540 = vmul.f32 %v533, %v523
        %v541 = vmul.f32 %v533, %v524
        %v542 = vmul.f32 %v533, %v525
        %v543 = vmul.f32 %v533, %v526
        %v544 = vmul.f32 %v533, %v527
        %v545 = vmul.f32 %v533, %v528
        %v546 = vmul.f32 %v533, %v529
        %v547 = vmul.f32 %v533, %v530
        %v548 = vmul.f32 %v533, %v531
        %v549 = vmul.f32 %v533, %v532
        %s550 = sld [smem:[#allocation2 + $0x5]]
        %v551 = vld [vmem:[%s284] sm:$0xff]
        %v552 = vld [vmem:[%s284 + $0x8] sm:$0xff]
        %v553 = vld [vmem:[%s284 + $0x10] sm:$0xff]
        %v554 = vld [vmem:[%s284 + $0x18] sm:$0xff]
        %v555 = vld [vmem:[%s284 + $0x20] sm:$0xff]
        %v556 = vld [vmem:[%s284 + $0x28] sm:$0xff]
        %v557 = vld [vmem:[%s284 + $0x30] sm:$0xff]
        %v558 = vld [vmem:[%s284 + $0x38] sm:$0xff]
        %v559 = vld [vmem:[%s284 + $0x40] sm:$0xff]
        %v560 = vld [vmem:[%s284 + $0x48] sm:$0xff]
        %v561 = vld [vmem:[%s284 + $0x50] sm:$0xff]
        %v562 = vld [vmem:[%s284 + $0x58] sm:$0xff]
        %v563 = vld [vmem:[%s284 + $0x60] sm:$0xff]
        %v564 = vld [vmem:[%s284 + $0x68] sm:$0xff]
        %v565 = vld [vmem:[%s284 + $0x70] sm:$0xff]
        %v566 = vld [vmem:[%s284 + $0x78] sm:$0xff]
        %v567 = vstv %s550
        %v568 = vmul.f32 %v567, %v551
        %v569 = vmul.f32 %v567, %v552
        %v570 = vmul.f32 %v567, %v553
        %v571 = vmul.f32 %v567, %v554
        %v572 = vmul.f32 %v567, %v555
        %v573 = vmul.f32 %v567, %v556
        %v574 = vmul.f32 %v567, %v557
        %v575 = vmul.f32 %v567, %v558
        %v576 = vmul.f32 %v567, %v559
        %v577 = vmul.f32 %v567, %v560
        %v578 = vmul.f32 %v567, %v561
        %v579 = vmul.f32 %v567, %v562
        %v580 = vmul.f32 %v567, %v563
        %v581 = vmul.f32 %v567, %v564
        %v582 = vmul.f32 %v567, %v565
        %v583 = vmul.f32 %v567, %v566
        %s584 = sld [smem:[#allocation2 + $0x6]]
        %v585 = vld [vmem:[%s319] sm:$0xff]
        %v586 = vld [vmem:[%s319 + $0x8] sm:$0xff]
        %v587 = vld [vmem:[%s319 + $0x10] sm:$0xff]
        %v588 = vld [vmem:[%s319 + $0x18] sm:$0xff]
        %v589 = vld [vmem:[%s319 + $0x20] sm:$0xff]
        %v590 = vld [vmem:[%s319 + $0x28] sm:$0xff]
        %v591 = vld [vmem:[%s319 + $0x30] sm:$0xff]
        %v592 = vld [vmem:[%s319 + $0x38] sm:$0xff]
        %v593 = vld [vmem:[%s319 + $0x40] sm:$0xff]
        %v594 = vld [vmem:[%s319 + $0x48] sm:$0xff]
        %v595 = vld [vmem:[%s319 + $0x50] sm:$0xff]
        %v596 = vld [vmem:[%s319 + $0x58] sm:$0xff]
        %v597 = vld [vmem:[%s319 + $0x60] sm:$0xff]
        %v598 = vld [vmem:[%s319 + $0x68] sm:$0xff]
        %v599 = vld [vmem:[%s319 + $0x70] sm:$0xff]
        %v600 = vld [vmem:[%s319 + $0x78] sm:$0xff]
        %v601 = vstv %s584
        %v602 = vmul.f32 %v601, %v585
        %v603 = vmul.f32 %v601, %v586
        %v604 = vmul.f32 %v601, %v587
        %v605 = vmul.f32 %v601, %v588
        %v606 = vmul.f32 %v601, %v589
        %v607 = vmul.f32 %v601, %v590
        %v608 = vmul.f32 %v601, %v591
        %v609 = vmul.f32 %v601, %v592
        %v610 = vmul.f32 %v601, %v593
        %v611 = vmul.f32 %v601, %v594
        %v612 = vmul.f32 %v601, %v595
        %v613 = vmul.f32 %v601, %v596
        %v614 = vmul.f32 %v601, %v597
        %v615 = vmul.f32 %v601, %v598
        %v616 = vmul.f32 %v601, %v599
        %v617 = vmul.f32 %v601, %v600
        %s618 = sld [smem:[#allocation2 + $0x7]]
        %v619 = vld [vmem:[%s354] sm:$0xff]
        %v620 = vld [vmem:[%s354 + $0x8] sm:$0xff]
        %v621 = vld [vmem:[%s354 + $0x10] sm:$0xff]
        %v622 = vld [vmem:[%s354 + $0x18] sm:$0xff]
        %v623 = vld [vmem:[%s354 + $0x20] sm:$0xff]
        %v624 = vld [vmem:[%s354 + $0x28] sm:$0xff]
        %v625 = vld [vmem:[%s354 + $0x30] sm:$0xff]
        %v626 = vld [vmem:[%s354 + $0x38] sm:$0xff]
        %v627 = vld [vmem:[%s354 + $0x40] sm:$0xff]
        %v628 = vld [vmem:[%s354 + $0x48] sm:$0xff]
        %v629 = vld [vmem:[%s354 + $0x50] sm:$0xff]
        %v630 = vld [vmem:[%s354 + $0x58] sm:$0xff]
        %v631 = vld [vmem:[%s354 + $0x60] sm:$0xff]
        %v632 = vld [vmem:[%s354 + $0x68] sm:$0xff]
        %v633 = vld [vmem:[%s354 + $0x70] sm:$0xff]
        %v634 = vld [vmem:[%s354 + $0x78] sm:$0xff]
        %v635 = vstv %s618
        %v636 = vmul.f32 %v635, %v619
        %v637 = vmul.f32 %v635, %v620
        %v638 = vmul.f32 %v635, %v621
        %v639 = vmul.f32 %v635, %v622
        %v640 = vmul.f32 %v635, %v623
        %v641 = vmul.f32 %v635, %v624
        %v642 = vmul.f32 %v635, %v625
        %v643 = vmul.f32 %v635, %v626
        %v644 = vmul.f32 %v635, %v627
        %v645 = vmul.f32 %v635, %v628
        %v646 = vmul.f32 %v635, %v629
        %v647 = vmul.f32 %v635, %v630
        %v648 = vmul.f32 %v635, %v631
        %v649 = vmul.f32 %v635, %v632
        %v650 = vmul.f32 %v635, %v633
        %v651 = vmul.f32 %v635, %v634
        %v652 = vadd.f32 %v534, %v568
        %v653 = vadd.f32 %v535, %v569
        %v654 = vadd.f32 %v536, %v570
        %v655 = vadd.f32 %v537, %v571
        %v656 = vadd.f32 %v538, %v572
        %v657 = vadd.f32 %v539, %v573
        %v658 = vadd.f32 %v540, %v574
        %v659 = vadd.f32 %v541, %v575
        %v660 = vadd.f32 %v542, %v576
        %v661 = vadd.f32 %v543, %v577
        %v662 = vadd.f32 %v544, %v578
        %v663 = vadd.f32 %v545, %v579
        %v664 = vadd.f32 %v546, %v580
        %v665 = vadd.f32 %v547, %v581
        %v666 = vadd.f32 %v548, %v582
        %v667 = vadd.f32 %v549, %v583
        %v668 = vadd.f32 %v602, %v636
        %v669 = vadd.f32 %v603, %v637
        %v670 = vadd.f32 %v604, %v638
        %v671 = vadd.f32 %v605, %v639
        %v672 = vadd.f32 %v606, %v640
        %v673 = vadd.f32 %v607, %v641
        %v674 = vadd.f32 %v608, %v642
        %v675 = vadd.f32 %v609, %v643
        %v676 = vadd.f32 %v610, %v644
        %v677 = vadd.f32 %v611, %v645
        %v678 = vadd.f32 %v612, %v646
        %v679 = vadd.f32 %v613, %v647
        %v680 = vadd.f32 %v614, %v648
        %v681 = vadd.f32 %v615, %v649
        %v682 = vadd.f32 %v616, %v650
        %v683 = vadd.f32 %v617, %v651
        %v684 = vadd.f32 %v652, %v668
        %v685 = vadd.f32 %v653, %v669
        %v686 = vadd.f32 %v654, %v670
        %v687 = vadd.f32 %v655, %v671
        %v688 = vadd.f32 %v656, %v672
        %v689 = vadd.f32 %v657, %v673
        %v690 = vadd.f32 %v658, %v674
        %v691 = vadd.f32 %v659, %v675
        %v692 = vadd.f32 %v660, %v676
        %v693 = vadd.f32 %v661, %v677
        %v694 = vadd.f32 %v662, %v678
        %v695 = vadd.f32 %v663, %v679
        %v696 = vadd.f32 %v664, %v680
        %v697 = vadd.f32 %v665, %v681
        %v698 = vadd.f32 %v666, %v682
        %v699 = vadd.f32 %v667, %v683
        %v700 = vpack.c.bf16 %v685, %v684
        %v701 = vpack.c.bf16 %v687, %v686
        %v702 = vpack.c.bf16 %v689, %v688
        %v703 = vpack.c.bf16 %v691, %v690
        %v704 = vpack.c.bf16 %v693, %v692
        %v705 = vpack.c.bf16 %v695, %v694
        %v706 = vpack.c.bf16 %v697, %v696
        %v707 = vpack.c.bf16 %v699, %v698
        %v716 = vunpack.c.l.b16 %v700
        %v717 = vunpack.c.h.b16 %v700
        %v718 = vunpack.c.l.b16 %v701
        %v719 = vunpack.c.h.b16 %v701
        %v720 = vunpack.c.l.b16 %v702
        %v721 = vunpack.c.h.b16 %v702
        %v722 = vunpack.c.l.b16 %v703
        %v723 = vunpack.c.h.b16 %v703
        %v724 = vunpack.c.l.b16 %v704
        %v725 = vunpack.c.h.b16 %v704
        %v726 = vunpack.c.l.b16 %v705
        %v727 = vunpack.c.h.b16 %v705
        %v728 = vunpack.c.l.b16 %v706
        %v729 = vunpack.c.h.b16 %v706
        %v730 = vunpack.c.l.b16 %v707
        %v731 = vunpack.c.h.b16 %v707
        %v732 = vpack.c.b16 %v716, %v716
        %v733 = vpack.c.b16 %v717, %v717
        %v734 = vpack.c.b16 %v718, %v718
        %v735 = vpack.c.b16 %v719, %v719
        %v736 = vpack.c.b16 %v720, %v720
        %v737 = vpack.c.b16 %v721, %v721
        %v738 = vpack.c.b16 %v722, %v722
        %v739 = vpack.c.b16 %v723, %v723
        %v740 = vpack.c.b16 %v724, %v724
        %v741 = vpack.c.b16 %v725, %v725
        %v742 = vpack.c.b16 %v726, %v726
        %v743 = vpack.c.b16 %v727, %v727
        %v744 = vpack.c.b16 %v728, %v728
        %v745 = vpack.c.b16 %v729, %v729
        %v746 = vpack.c.b16 %v730, %v730
        %v747 = vpack.c.b16 %v731, %v731
        %s764 = scalar_lea.vmem %s238, 64 [#allocation7]
        %765 = vst [vmem:[%s764] sm:$0xf] %v732
        %766 = vst [vmem:[%s764 + $0x4] sm:$0xf] %v733
        %767 = vst [vmem:[%s764 + $0x8] sm:$0xf] %v734
        %768 = vst [vmem:[%s764 + $0xc] sm:$0xf] %v735
        %769 = vst [vmem:[%s764 + $0x10] sm:$0xf] %v736
        %770 = vst [vmem:[%s764 + $0x14] sm:$0xf] %v737
        %771 = vst [vmem:[%s764 + $0x18] sm:$0xf] %v738
        %772 = vst [vmem:[%s764 + $0x1c] sm:$0xf] %v739
        %773 = vst [vmem:[%s764 + $0x20] sm:$0xf] %v740
        %774 = vst [vmem:[%s764 + $0x24] sm:$0xf] %v741
        %775 = vst [vmem:[%s764 + $0x28] sm:$0xf] %v742
        %776 = vst [vmem:[%s764 + $0x2c] sm:$0xf] %v743
        %777 = vst [vmem:[%s764 + $0x30] sm:$0xf] %v744
        %778 = vst [vmem:[%s764 + $0x34] sm:$0xf] %v745
        %779 = vst [vmem:[%s764 + $0x38] sm:$0xf] %v746
        %780 = vst [vmem:[%s764 + $0x3c] sm:$0xf] %v747
        %s781 = sld [smem:[#allocation2 + $0x8]]
        %v782 = vld [vmem:[%s217] sm:$0xff]
        %v783 = vld [vmem:[%s217 + $0x8] sm:$0xff]
        %v784 = vld [vmem:[%s217 + $0x10] sm:$0xff]
        %v785 = vld [vmem:[%s217 + $0x18] sm:$0xff]
        %v786 = vld [vmem:[%s217 + $0x20] sm:$0xff]
        %v787 = vld [vmem:[%s217 + $0x28] sm:$0xff]
        %v788 = vld [vmem:[%s217 + $0x30] sm:$0xff]
        %v789 = vld [vmem:[%s217 + $0x38] sm:$0xff]
        %v790 = vld [vmem:[%s217 + $0x40] sm:$0xff]
        %v791 = vld [vmem:[%s217 + $0x48] sm:$0xff]
        %v792 = vld [vmem:[%s217 + $0x50] sm:$0xff]
        %v793 = vld [vmem:[%s217 + $0x58] sm:$0xff]
        %v794 = vld [vmem:[%s217 + $0x60] sm:$0xff]
        %v795 = vld [vmem:[%s217 + $0x68] sm:$0xff]
        %v796 = vld [vmem:[%s217 + $0x70] sm:$0xff]
        %v797 = vld [vmem:[%s217 + $0x78] sm:$0xff]
        %v798 = vstv %s781
        %v799 = vmul.f32 %v798, %v782
        %v800 = vmul.f32 %v798, %v783
        %v801 = vmul.f32 %v798, %v784
        %v802 = vmul.f32 %v798, %v785
        %v803 = vmul.f32 %v798, %v786
        %v804 = vmul.f32 %v798, %v787
        %v805 = vmul.f32 %v798, %v788
        %v806 = vmul.f32 %v798, %v789
        %v807 = vmul.f32 %v798, %v790
        %v808 = vmul.f32 %v798, %v791
        %v809 = vmul.f32 %v798, %v792
        %v810 = vmul.f32 %v798, %v793
        %v811 = vmul.f32 %v798, %v794
        %v812 = vmul.f32 %v798, %v795
        %v813 = vmul.f32 %v798, %v796
        %v814 = vmul.f32 %v798, %v797
        %s815 = sld [smem:[#allocation2 + $0x9]]
        %v816 = vld [vmem:[%s284] sm:$0xff]
        %v817 = vld [vmem:[%s284 + $0x8] sm:$0xff]
        %v818 = vld [vmem:[%s284 + $0x10] sm:$0xff]
        %v819 = vld [vmem:[%s284 + $0x18] sm:$0xff]
        %v820 = vld [vmem:[%s284 + $0x20] sm:$0xff]
        %v821 = vld [vmem:[%s284 + $0x28] sm:$0xff]
        %v822 = vld [vmem:[%s284 + $0x30] sm:$0xff]
        %v823 = vld [vmem:[%s284 + $0x38] sm:$0xff]
        %v824 = vld [vmem:[%s284 + $0x40] sm:$0xff]
        %v825 = vld [vmem:[%s284 + $0x48] sm:$0xff]
        %v826 = vld [vmem:[%s284 + $0x50] sm:$0xff]
        %v827 = vld [vmem:[%s284 + $0x58] sm:$0xff]
        %v828 = vld [vmem:[%s284 + $0x60] sm:$0xff]
        %v829 = vld [vmem:[%s284 + $0x68] sm:$0xff]
        %v830 = vld [vmem:[%s284 + $0x70] sm:$0xff]
        %v831 = vld [vmem:[%s284 + $0x78] sm:$0xff]
        %v832 = vstv %s815
        %v833 = vmul.f32 %v832, %v816
        %v834 = vmul.f32 %v832, %v817
        %v835 = vmul.f32 %v832, %v818
        %v836 = vmul.f32 %v832, %v819
        %v837 = vmul.f32 %v832, %v820
        %v838 = vmul.f32 %v832, %v821
        %v839 = vmul.f32 %v832, %v822
        %v840 = vmul.f32 %v832, %v823
        %v841 = vmul.f32 %v832, %v824
        %v842 = vmul.f32 %v832, %v825
        %v843 = vmul.f32 %v832, %v826
        %v844 = vmul.f32 %v832, %v827
        %v845 = vmul.f32 %v832, %v828
        %v846 = vmul.f32 %v832, %v829
        %v847 = vmul.f32 %v832, %v830
        %v848 = vmul.f32 %v832, %v831
        %s849 = sld [smem:[#allocation2 + $0xa]]
        %v850 = vld [vmem:[%s319] sm:$0xff]
        %v851 = vld [vmem:[%s319 + $0x8] sm:$0xff]
        %v852 = vld [vmem:[%s319 + $0x10] sm:$0xff]
        %v853 = vld [vmem:[%s319 + $0x18] sm:$0xff]
        %v854 = vld [vmem:[%s319 + $0x20] sm:$0xff]
        %v855 = vld [vmem:[%s319 + $0x28] sm:$0xff]
        %v856 = vld [vmem:[%s319 + $0x30] sm:$0xff]
        %v857 = vld [vmem:[%s319 + $0x38] sm:$0xff]
        %v858 = vld [vmem:[%s319 + $0x40] sm:$0xff]
        %v859 = vld [vmem:[%s319 + $0x48] sm:$0xff]
        %v860 = vld [vmem:[%s319 + $0x50] sm:$0xff]
        %v861 = vld [vmem:[%s319 + $0x58] sm:$0xff]
        %v862 = vld [vmem:[%s319 + $0x60] sm:$0xff]
        %v863 = vld [vmem:[%s319 + $0x68] sm:$0xff]
        %v864 = vld [vmem:[%s319 + $0x70] sm:$0xff]
        %v865 = vld [vmem:[%s319 + $0x78] sm:$0xff]
        %v866 = vstv %s849
        %v867 = vmul.f32 %v866, %v850
        %v868 = vmul.f32 %v866, %v851
        %v869 = vmul.f32 %v866, %v852
        %v870 = vmul.f32 %v866, %v853
        %v871 = vmul.f32 %v866, %v854
        %v872 = vmul.f32 %v866, %v855
        %v873 = vmul.f32 %v866, %v856
        %v874 = vmul.f32 %v866, %v857
        %v875 = vmul.f32 %v866, %v858
        %v876 = vmul.f32 %v866, %v859
        %v877 = vmul.f32 %v866, %v860
        %v878 = vmul.f32 %v866, %v861
        %v879 = vmul.f32 %v866, %v862
        %v880 = vmul.f32 %v866, %v863
        %v881 = vmul.f32 %v866, %v864
        %v882 = vmul.f32 %v866, %v865
        %s883 = sld [smem:[#allocation2 + $0xb]]
        %v884 = vld [vmem:[%s354] sm:$0xff]
        %v885 = vld [vmem:[%s354 + $0x8] sm:$0xff]
        %v886 = vld [vmem:[%s354 + $0x10] sm:$0xff]
        %v887 = vld [vmem:[%s354 + $0x18] sm:$0xff]
        %v888 = vld [vmem:[%s354 + $0x20] sm:$0xff]
        %v889 = vld [vmem:[%s354 + $0x28] sm:$0xff]
        %v890 = vld [vmem:[%s354 + $0x30] sm:$0xff]
        %v891 = vld [vmem:[%s354 + $0x38] sm:$0xff]
        %v892 = vld [vmem:[%s354 + $0x40] sm:$0xff]
        %v893 = vld [vmem:[%s354 + $0x48] sm:$0xff]
        %v894 = vld [vmem:[%s354 + $0x50] sm:$0xff]
        %v895 = vld [vmem:[%s354 + $0x58] sm:$0xff]
        %v896 = vld [vmem:[%s354 + $0x60] sm:$0xff]
        %v897 = vld [vmem:[%s354 + $0x68] sm:$0xff]
        %v898 = vld [vmem:[%s354 + $0x70] sm:$0xff]
        %v899 = vld [vmem:[%s354 + $0x78] sm:$0xff]
        %v900 = vstv %s883
        %v901 = vmul.f32 %v900, %v884
        %v902 = vmul.f32 %v900, %v885
        %v903 = vmul.f32 %v900, %v886
        %v904 = vmul.f32 %v900, %v887
        %v905 = vmul.f32 %v900, %v888
        %v906 = vmul.f32 %v900, %v889
        %v907 = vmul.f32 %v900, %v890
        %v908 = vmul.f32 %v900, %v891
        %v909 = vmul.f32 %v900, %v892
        %v910 = vmul.f32 %v900, %v893
        %v911 = vmul.f32 %v900, %v894
        %v912 = vmul.f32 %v900, %v895
        %v913 = vmul.f32 %v900, %v896
        %v914 = vmul.f32 %v900, %v897
        %v915 = vmul.f32 %v900, %v898
        %v916 = vmul.f32 %v900, %v899
        %v917 = vadd.f32 %v799, %v833
        %v918 = vadd.f32 %v800, %v834
        %v919 = vadd.f32 %v801, %v835
        %v920 = vadd.f32 %v802, %v836
        %v921 = vadd.f32 %v803, %v837
        %v922 = vadd.f32 %v804, %v838
        %v923 = vadd.f32 %v805, %v839
        %v924 = vadd.f32 %v806, %v840
        %v925 = vadd.f32 %v807, %v841
        %v926 = vadd.f32 %v808, %v842
        %v927 = vadd.f32 %v809, %v843
        %v928 = vadd.f32 %v810, %v844
        %v929 = vadd.f32 %v811, %v845
        %v930 = vadd.f32 %v812, %v846
        %v931 = vadd.f32 %v813, %v847
        %v932 = vadd.f32 %v814, %v848
        %v933 = vadd.f32 %v867, %v901
        %v934 = vadd.f32 %v868, %v902
        %v935 = vadd.f32 %v869, %v903
        %v936 = vadd.f32 %v870, %v904
        %v937 = vadd.f32 %v871, %v905
        %v938 = vadd.f32 %v872, %v906
        %v939 = vadd.f32 %v873, %v907
        %v940 = vadd.f32 %v874, %v908
        %v941 = vadd.f32 %v875, %v909
        %v942 = vadd.f32 %v876, %v910
        %v943 = vadd.f32 %v877, %v911
        %v944 = vadd.f32 %v878, %v912
        %v945 = vadd.f32 %v879, %v913
        %v946 = vadd.f32 %v880, %v914
        %v947 = vadd.f32 %v881, %v915
        %v948 = vadd.f32 %v882, %v916
        %v949 = vadd.f32 %v917, %v933
        %v950 = vadd.f32 %v918, %v934
        %v951 = vadd.f32 %v919, %v935
        %v952 = vadd.f32 %v920, %v936
        %v953 = vadd.f32 %v921, %v937
        %v954 = vadd.f32 %v922, %v938
        %v955 = vadd.f32 %v923, %v939
        %v956 = vadd.f32 %v924, %v940
        %v957 = vadd.f32 %v925, %v941
        %v958 = vadd.f32 %v926, %v942
        %v959 = vadd.f32 %v927, %v943
        %v960 = vadd.f32 %v928, %v944
        %v961 = vadd.f32 %v929, %v945
        %v962 = vadd.f32 %v930, %v946
        %v963 = vadd.f32 %v931, %v947
        %v964 = vadd.f32 %v932, %v948
        %v965 = vpack.c.bf16 %v950, %v949
        %v966 = vpack.c.bf16 %v952, %v951
        %v967 = vpack.c.bf16 %v954, %v953
        %v968 = vpack.c.bf16 %v956, %v955
        %v969 = vpack.c.bf16 %v958, %v957
        %v970 = vpack.c.bf16 %v960, %v959
        %v971 = vpack.c.bf16 %v962, %v961
        %v972 = vpack.c.bf16 %v964, %v963
        %v981 = vunpack.c.l.b16 %v965
        %v982 = vunpack.c.h.b16 %v965
        %v983 = vunpack.c.l.b16 %v966
        %v984 = vunpack.c.h.b16 %v966
        %v985 = vunpack.c.l.b16 %v967
        %v986 = vunpack.c.h.b16 %v967
        %v987 = vunpack.c.l.b16 %v968
        %v988 = vunpack.c.h.b16 %v968
        %v989 = vunpack.c.l.b16 %v969
        %v990 = vunpack.c.h.b16 %v969
        %v991 = vunpack.c.l.b16 %v970
        %v992 = vunpack.c.h.b16 %v970
        %v993 = vunpack.c.l.b16 %v971
        %v994 = vunpack.c.h.b16 %v971
        %v995 = vunpack.c.l.b16 %v972
        %v996 = vunpack.c.h.b16 %v972
        %v997 = vpack.c.b16 %v981, %v981
        %v998 = vpack.c.b16 %v982, %v982
        %v999 = vpack.c.b16 %v983, %v983
        %v1000 = vpack.c.b16 %v984, %v984
        %v1001 = vpack.c.b16 %v985, %v985
        %v1002 = vpack.c.b16 %v986, %v986
        %v1003 = vpack.c.b16 %v987, %v987
        %v1004 = vpack.c.b16 %v988, %v988
        %v1005 = vpack.c.b16 %v989, %v989
        %v1006 = vpack.c.b16 %v990, %v990
        %v1007 = vpack.c.b16 %v991, %v991
        %v1008 = vpack.c.b16 %v992, %v992
        %v1009 = vpack.c.b16 %v993, %v993
        %v1010 = vpack.c.b16 %v994, %v994
        %v1011 = vpack.c.b16 %v995, %v995
        %v1012 = vpack.c.b16 %v996, %v996
        %1029 = vst [vmem:[%s245] sm:$0xf] %v997
        %1030 = vst [vmem:[%s245 + $0x4] sm:$0xf] %v998
        %1031 = vst [vmem:[%s245 + $0x8] sm:$0xf] %v999
        %1032 = vst [vmem:[%s245 + $0xc] sm:$0xf] %v1000
        %1033 = vst [vmem:[%s245 + $0x10] sm:$0xf] %v1001
        %1034 = vst [vmem:[%s245 + $0x14] sm:$0xf] %v1002
        %1035 = vst [vmem:[%s245 + $0x18] sm:$0xf] %v1003
        %1036 = vst [vmem:[%s245 + $0x1c] sm:$0xf] %v1004
        %1037 = vst [vmem:[%s245 + $0x20] sm:$0xf] %v1005
        %1038 = vst [vmem:[%s245 + $0x24] sm:$0xf] %v1006
        %1039 = vst [vmem:[%s245 + $0x28] sm:$0xf] %v1007
        %1040 = vst [vmem:[%s245 + $0x2c] sm:$0xf] %v1008
        %1041 = vst [vmem:[%s245 + $0x30] sm:$0xf] %v1009
        %1042 = vst [vmem:[%s245 + $0x34] sm:$0xf] %v1010
        %1043 = vst [vmem:[%s245 + $0x38] sm:$0xf] %v1011
        %1044 = vst [vmem:[%s245 + $0x3c] sm:$0xf] %v1012
        %s1045 = sld [smem:[#allocation2 + $0xc]]
        %v1046 = vld [vmem:[%s217] sm:$0xff]
        %v1047 = vld [vmem:[%s217 + $0x8] sm:$0xff]
        %v1048 = vld [vmem:[%s217 + $0x10] sm:$0xff]
        %v1049 = vld [vmem:[%s217 + $0x18] sm:$0xff]
        %v1050 = vld [vmem:[%s217 + $0x20] sm:$0xff]
        %v1051 = vld [vmem:[%s217 + $0x28] sm:$0xff]
        %v1052 = vld [vmem:[%s217 + $0x30] sm:$0xff]
        %v1053 = vld [vmem:[%s217 + $0x38] sm:$0xff]
        %v1054 = vld [vmem:[%s217 + $0x40] sm:$0xff]
        %v1055 = vld [vmem:[%s217 + $0x48] sm:$0xff]
        %v1056 = vld [vmem:[%s217 + $0x50] sm:$0xff]
        %v1057 = vld [vmem:[%s217 + $0x58] sm:$0xff]
        %v1058 = vld [vmem:[%s217 + $0x60] sm:$0xff]
        %v1059 = vld [vmem:[%s217 + $0x68] sm:$0xff]
        %v1060 = vld [vmem:[%s217 + $0x70] sm:$0xff]
        %v1061 = vld [vmem:[%s217 + $0x78] sm:$0xff]
        %v1062 = vstv %s1045
        %v1063 = vmul.f32 %v1062, %v1046
        %v1064 = vmul.f32 %v1062, %v1047
        %v1065 = vmul.f32 %v1062, %v1048
        %v1066 = vmul.f32 %v1062, %v1049
        %v1067 = vmul.f32 %v1062, %v1050
        %v1068 = vmul.f32 %v1062, %v1051
        %v1069 = vmul.f32 %v1062, %v1052
        %v1070 = vmul.f32 %v1062, %v1053
        %v1071 = vmul.f32 %v1062, %v1054
        %v1072 = vmul.f32 %v1062, %v1055
        %v1073 = vmul.f32 %v1062, %v1056
        %v1074 = vmul.f32 %v1062, %v1057
        %v1075 = vmul.f32 %v1062, %v1058
        %v1076 = vmul.f32 %v1062, %v1059
        %v1077 = vmul.f32 %v1062, %v1060
        %v1078 = vmul.f32 %v1062, %v1061
        %s1079 = sld [smem:[#allocation2 + $0xd]]
        %v1080 = vld [vmem:[%s284] sm:$0xff]
        %v1081 = vld [vmem:[%s284 + $0x8] sm:$0xff]
        %v1082 = vld [vmem:[%s284 + $0x10] sm:$0xff]
        %v1083 = vld [vmem:[%s284 + $0x18] sm:$0xff]
        %v1084 = vld [vmem:[%s284 + $0x20] sm:$0xff]
        %v1085 = vld [vmem:[%s284 + $0x28] sm:$0xff]
        %v1086 = vld [vmem:[%s284 + $0x30] sm:$0xff]
        %v1087 = vld [vmem:[%s284 + $0x38] sm:$0xff]
        %v1088 = vld [vmem:[%s284 + $0x40] sm:$0xff]
        %v1089 = vld [vmem:[%s284 + $0x48] sm:$0xff]
        %v1090 = vld [vmem:[%s284 + $0x50] sm:$0xff]
        %v1091 = vld [vmem:[%s284 + $0x58] sm:$0xff]
        %v1092 = vld [vmem:[%s284 + $0x60] sm:$0xff]
        %v1093 = vld [vmem:[%s284 + $0x68] sm:$0xff]
        %v1094 = vld [vmem:[%s284 + $0x70] sm:$0xff]
        %v1095 = vld [vmem:[%s284 + $0x78] sm:$0xff]
        %v1096 = vstv %s1079
        %v1097 = vmul.f32 %v1096, %v1080
        %v1098 = vmul.f32 %v1096, %v1081
        %v1099 = vmul.f32 %v1096, %v1082
        %v1100 = vmul.f32 %v1096, %v1083
        %v1101 = vmul.f32 %v1096, %v1084
        %v1102 = vmul.f32 %v1096, %v1085
        %v1103 = vmul.f32 %v1096, %v1086
        %v1104 = vmul.f32 %v1096, %v1087
        %v1105 = vmul.f32 %v1096, %v1088
        %v1106 = vmul.f32 %v1096, %v1089
        %v1107 = vmul.f32 %v1096, %v1090
        %v1108 = vmul.f32 %v1096, %v1091
        %v1109 = vmul.f32 %v1096, %v1092
        %v1110 = vmul.f32 %v1096, %v1093
        %v1111 = vmul.f32 %v1096, %v1094
        %v1112 = vmul.f32 %v1096, %v1095
        %s1113 = sld [smem:[#allocation2 + $0xe]]
        %v1114 = vld [vmem:[%s319] sm:$0xff]
        %v1115 = vld [vmem:[%s319 + $0x8] sm:$0xff]
        %v1116 = vld [vmem:[%s319 + $0x10] sm:$0xff]
        %v1117 = vld [vmem:[%s319 + $0x18] sm:$0xff]
        %v1118 = vld [vmem:[%s319 + $0x20] sm:$0xff]
        %v1119 = vld [vmem:[%s319 + $0x28] sm:$0xff]
        %v1120 = vld [vmem:[%s319 + $0x30] sm:$0xff]
        %v1121 = vld [vmem:[%s319 + $0x38] sm:$0xff]
        %v1122 = vld [vmem:[%s319 + $0x40] sm:$0xff]
        %v1123 = vld [vmem:[%s319 + $0x48] sm:$0xff]
        %v1124 = vld [vmem:[%s319 + $0x50] sm:$0xff]
        %v1125 = vld [vmem:[%s319 + $0x58] sm:$0xff]
        %v1126 = vld [vmem:[%s319 + $0x60] sm:$0xff]
        %v1127 = vld [vmem:[%s319 + $0x68] sm:$0xff]
        %v1128 = vld [vmem:[%s319 + $0x70] sm:$0xff]
        %v1129 = vld [vmem:[%s319 + $0x78] sm:$0xff]
        %v1130 = vstv %s1113
        %v1131 = vmul.f32 %v1130, %v1114
        %v1132 = vmul.f32 %v1130, %v1115
        %v1133 = vmul.f32 %v1130, %v1116
        %v1134 = vmul.f32 %v1130, %v1117
        %v1135 = vmul.f32 %v1130, %v1118
        %v1136 = vmul.f32 %v1130, %v1119
        %v1137 = vmul.f32 %v1130, %v1120
        %v1138 = vmul.f32 %v1130, %v1121
        %v1139 = vmul.f32 %v1130, %v1122
        %v1140 = vmul.f32 %v1130, %v1123
        %v1141 = vmul.f32 %v1130, %v1124
        %v1142 = vmul.f32 %v1130, %v1125
        %v1143 = vmul.f32 %v1130, %v1126
        %v1144 = vmul.f32 %v1130, %v1127
        %v1145 = vmul.f32 %v1130, %v1128
        %v1146 = vmul.f32 %v1130, %v1129
        %s1147 = sld [smem:[#allocation2 + $0xf]]
        %v1148 = vld [vmem:[%s354] sm:$0xff]
        %v1149 = vld [vmem:[%s354 + $0x8] sm:$0xff]
        %v1150 = vld [vmem:[%s354 + $0x10] sm:$0xff]
        %v1151 = vld [vmem:[%s354 + $0x18] sm:$0xff]
        %v1152 = vld [vmem:[%s354 + $0x20] sm:$0xff]
        %v1153 = vld [vmem:[%s354 + $0x28] sm:$0xff]
        %v1154 = vld [vmem:[%s354 + $0x30] sm:$0xff]
        %v1155 = vld [vmem:[%s354 + $0x38] sm:$0xff]
        %v1156 = vld [vmem:[%s354 + $0x40] sm:$0xff]
        %v1157 = vld [vmem:[%s354 + $0x48] sm:$0xff]
        %v1158 = vld [vmem:[%s354 + $0x50] sm:$0xff]
        %v1159 = vld [vmem:[%s354 + $0x58] sm:$0xff]
        %v1160 = vld [vmem:[%s354 + $0x60] sm:$0xff]
        %v1161 = vld [vmem:[%s354 + $0x68] sm:$0xff]
        %v1162 = vld [vmem:[%s354 + $0x70] sm:$0xff]
        %v1163 = vld [vmem:[%s354 + $0x78] sm:$0xff]
        %v1164 = vstv %s1147
        %v1165 = vmul.f32 %v1164, %v1148
        %v1166 = vmul.f32 %v1164, %v1149
        %v1167 = vmul.f32 %v1164, %v1150
        %v1168 = vmul.f32 %v1164, %v1151
        %v1169 = vmul.f32 %v1164, %v1152
        %v1170 = vmul.f32 %v1164, %v1153
        %v1171 = vmul.f32 %v1164, %v1154
        %v1172 = vmul.f32 %v1164, %v1155
        %v1173 = vmul.f32 %v1164, %v1156
        %v1174 = vmul.f32 %v1164, %v1157
        %v1175 = vmul.f32 %v1164, %v1158
        %v1176 = vmul.f32 %v1164, %v1159
        %v1177 = vmul.f32 %v1164, %v1160
        %v1178 = vmul.f32 %v1164, %v1161
        %v1179 = vmul.f32 %v1164, %v1162
        %v1180 = vmul.f32 %v1164, %v1163
        %v1181 = vadd.f32 %v1063, %v1097
        %v1182 = vadd.f32 %v1064, %v1098
        %v1183 = vadd.f32 %v1065, %v1099
        %v1184 = vadd.f32 %v1066, %v1100
        %v1185 = vadd.f32 %v1067, %v1101
        %v1186 = vadd.f32 %v1068, %v1102
        %v1187 = vadd.f32 %v1069, %v1103
        %v1188 = vadd.f32 %v1070, %v1104
        %v1189 = vadd.f32 %v1071, %v1105
        %v1190 = vadd.f32 %v1072, %v1106
        %v1191 = vadd.f32 %v1073, %v1107
        %v1192 = vadd.f32 %v1074, %v1108
        %v1193 = vadd.f32 %v1075, %v1109
        %v1194 = vadd.f32 %v1076, %v1110
        %v1195 = vadd.f32 %v1077, %v1111
        %v1196 = vadd.f32 %v1078, %v1112
        %v1197 = vadd.f32 %v1131, %v1165
        %v1198 = vadd.f32 %v1132, %v1166
        %v1199 = vadd.f32 %v1133, %v1167
        %v1200 = vadd.f32 %v1134, %v1168
        %v1201 = vadd.f32 %v1135, %v1169
        %v1202 = vadd.f32 %v1136, %v1170
        %v1203 = vadd.f32 %v1137, %v1171
        %v1204 = vadd.f32 %v1138, %v1172
        %v1205 = vadd.f32 %v1139, %v1173
        %v1206 = vadd.f32 %v1140, %v1174
        %v1207 = vadd.f32 %v1141, %v1175
        %v1208 = vadd.f32 %v1142, %v1176
        %v1209 = vadd.f32 %v1143, %v1177
        %v1210 = vadd.f32 %v1144, %v1178
        %v1211 = vadd.f32 %v1145, %v1179
        %v1212 = vadd.f32 %v1146, %v1180
        %v1213 = vadd.f32 %v1181, %v1197
        %v1214 = vadd.f32 %v1182, %v1198
        %v1215 = vadd.f32 %v1183, %v1199
        %v1216 = vadd.f32 %v1184, %v1200
        %v1217 = vadd.f32 %v1185, %v1201
        %v1218 = vadd.f32 %v1186, %v1202
        %v1219 = vadd.f32 %v1187, %v1203
        %v1220 = vadd.f32 %v1188, %v1204
        %v1221 = vadd.f32 %v1189, %v1205
        %v1222 = vadd.f32 %v1190, %v1206
        %v1223 = vadd.f32 %v1191, %v1207
        %v1224 = vadd.f32 %v1192, %v1208
        %v1225 = vadd.f32 %v1193, %v1209
        %v1226 = vadd.f32 %v1194, %v1210
        %v1227 = vadd.f32 %v1195, %v1211
        %v1228 = vadd.f32 %v1196, %v1212
        %v1229 = vpack.c.bf16 %v1214, %v1213
        %v1230 = vpack.c.bf16 %v1216, %v1215
        %v1231 = vpack.c.bf16 %v1218, %v1217
        %v1232 = vpack.c.bf16 %v1220, %v1219
        %v1233 = vpack.c.bf16 %v1222, %v1221
        %v1234 = vpack.c.bf16 %v1224, %v1223
        %v1235 = vpack.c.bf16 %v1226, %v1225
        %v1236 = vpack.c.bf16 %v1228, %v1227
        %v1245 = vunpack.c.l.b16 %v1229
        %v1246 = vunpack.c.h.b16 %v1229
        %v1247 = vunpack.c.l.b16 %v1230
        %v1248 = vunpack.c.h.b16 %v1230
        %v1249 = vunpack.c.l.b16 %v1231
        %v1250 = vunpack.c.h.b16 %v1231
        %v1251 = vunpack.c.l.b16 %v1232
        %v1252 = vunpack.c.h.b16 %v1232
        %v1253 = vunpack.c.l.b16 %v1233
        %v1254 = vunpack.c.h.b16 %v1233
        %v1255 = vunpack.c.l.b16 %v1234
        %v1256 = vunpack.c.h.b16 %v1234
        %v1257 = vunpack.c.l.b16 %v1235
        %v1258 = vunpack.c.h.b16 %v1235
        %v1259 = vunpack.c.l.b16 %v1236
        %v1260 = vunpack.c.h.b16 %v1236
        %v1261 = vpack.c.b16 %v1245, %v1245
        %v1262 = vpack.c.b16 %v1246, %v1246
        %v1263 = vpack.c.b16 %v1247, %v1247
        %v1264 = vpack.c.b16 %v1248, %v1248
        %v1265 = vpack.c.b16 %v1249, %v1249
        %v1266 = vpack.c.b16 %v1250, %v1250
        %v1267 = vpack.c.b16 %v1251, %v1251
        %v1268 = vpack.c.b16 %v1252, %v1252
        %v1269 = vpack.c.b16 %v1253, %v1253
        %v1270 = vpack.c.b16 %v1254, %v1254
        %v1271 = vpack.c.b16 %v1255, %v1255
        %v1272 = vpack.c.b16 %v1256, %v1256
        %v1273 = vpack.c.b16 %v1257, %v1257
        %v1274 = vpack.c.b16 %v1258, %v1258
        %v1275 = vpack.c.b16 %v1259, %v1259
        %v1276 = vpack.c.b16 %v1260, %v1260
        %s1293 = scalar_lea.vmem %s245, 64 [#allocation8]
        %1294 = vst [vmem:[%s1293] sm:$0xf] %v1261
        %1295 = vst [vmem:[%s1293 + $0x4] sm:$0xf] %v1262
        %1296 = vst [vmem:[%s1293 + $0x8] sm:$0xf] %v1263
        %1297 = vst [vmem:[%s1293 + $0xc] sm:$0xf] %v1264
        %1298 = vst [vmem:[%s1293 + $0x10] sm:$0xf] %v1265
        %1299 = vst [vmem:[%s1293 + $0x14] sm:$0xf] %v1266
        %1300 = vst [vmem:[%s1293 + $0x18] sm:$0xf] %v1267
        %1301 = vst [vmem:[%s1293 + $0x1c] sm:$0xf] %v1268
        %1302 = vst [vmem:[%s1293 + $0x20] sm:$0xf] %v1269
        %1303 = vst [vmem:[%s1293 + $0x24] sm:$0xf] %v1270
        %1304 = vst [vmem:[%s1293 + $0x28] sm:$0xf] %v1271
        %1305 = vst [vmem:[%s1293 + $0x2c] sm:$0xf] %v1272
        %1306 = vst [vmem:[%s1293 + $0x30] sm:$0xf] %v1273
        %1307 = vst [vmem:[%s1293 + $0x34] sm:$0xf] %v1274
        %1308 = vst [vmem:[%s1293 + $0x38] sm:$0xf] %v1275
        %1309 = vst [vmem:[%s1293 + $0x3c] sm:$0xf] %v1276
        %s1310 = sand.u32 %s107, 1
        %s1311 = scalar_lea.sflag [#allocation4], %s1310
        %s1312 = sand.u32 %s107, 1
        %s1313 = smul.addr %s1312, 128
        %s1314 = scalar_lea.vmem [#allocation7], %s1313
        %s1315 = sand.u32 %s137, 1
        %s1316 = scalar_lea.sflag [#allocation9], %s1315
        %s1317 = sand.u32 %s137, 1
        %s1318 = smul.addr %s1317, 128
        %s1319 = scalar_lea.vmem [#allocation8], %s1318
        // Predicated region
        $region37: #{tpu_custom_call.1} parent=27 // pred_check
          %p1320 = pneg %p117
        $region38: #{tpu_custom_call.1} parent=27 // pred_check_branch
          %1322 = sbr.rel (%p1320) target = $region40
        $region39: #{tpu_custom_call.1} parent=27 // pred_region
          %s1323 = smul.u32 16, %s31
          %s1325 = ssub.s32 2048, 2048
          %1326 = vsyncadd %s1311, %s1325
          %s1327 = sadd.s32 %s32, %s1323
          %s1328 = smul.addr %s30, 32
          %s1329 = sadd.s32 %s1327, %s1328
          %s1330 = smul.addr %s1329, 64
          %s1331 = scalar_lea.hbm %s2, %s1330
          %s1332 = sshll.u32 %s1314, 4
          %s1333 = int_to_ptr.vmem [resolvable:$true] %s1332
          %1338 = dma.vmem_to_hbm [thread:$0]  %s1333, 2048, %s1331, %s1311, 64, 64, 4
        $region40: #{tpu_custom_call.1} parent=27 // pred_fallthru
          _
        // Predicated region
        $region41: #{tpu_custom_call.1} parent=27 // pred_check
          %p1339 = pneg %p147
        $region42: #{tpu_custom_call.1} parent=27 // pred_check_branch
          %1341 = sbr.rel (%p1339) target = $region44
        $region43: #{tpu_custom_call.1} parent=27 // pred_region
          %s1342 = smul.u32 16, %s31
          %s1344 = ssub.s32 2048, 2048
          %1345 = vsyncadd %s1316, %s1344
          %s1346 = sadd.s32 %s32, %s1342
          %s1347 = smul.addr %s30, 32
          %s1348 = sadd.s32 %s1346, %s1347
          %s1349 = smul.addr %s1348, 64
          %s1350 = scalar_lea.hbm %s3, %s1349
          %s1351 = sshll.u32 %s1319, 4
          %s1352 = int_to_ptr.vmem [resolvable:$true] %s1351
          %1357 = dma.vmem_to_hbm [thread:$0]  %s1352, 2048, %s1350, %s1316, 64, 64, 4
        $region44: #{tpu_custom_call.1} parent=27 // pred_fallthru
          _
      $region28: #{tpu_custom_call.1} parent=5 // pred_fallthru
        _
      %p1358 = scmp.le.s32.totalorder 2, %s20
      // Predicated region
      $region45: #{tpu_custom_call.1} parent=5 // pred_check
        %p1359 = pneg %p1358
      $region46: #{tpu_custom_call.1} parent=5 // pred_check_branch
        %1361 = sbr.rel (%p1359) target = $region48
      $region47: #{tpu_custom_call.1} parent=5 // pred_region
        %s1362 = ssub.s32 %s20, 2
        // Predicated region
        $region49: #{tpu_custom_call.1} parent=47 // pred_check
          %p1363 = pneg %p123
        $region50: #{tpu_custom_call.1} parent=47 // pred_check_branch
          %1365 = sbr.rel (%p1363) target = $region52
        $region51: #{tpu_custom_call.1} parent=47 // pred_region
          %s1366 = sand.u32 %s108, 1
          %s1367 = scalar_lea.sflag [#allocation4], %s1366
          %s1368 = sand.u32 %s108, 1
          %s1369 = smul.addr %s1368, 128
          %s1370 = scalar_lea.vmem [#allocation7], %s1369
          %1371 = dma.done %s1367, 2048
        $region52: #{tpu_custom_call.1} parent=47 // pred_fallthru
          _
        // Predicated region
        $region53: #{tpu_custom_call.1} parent=47 // pred_check
          %p1372 = pneg %p153
        $region54: #{tpu_custom_call.1} parent=47 // pred_check_branch
          %1374 = sbr.rel (%p1372) target = $region56
        $region55: #{tpu_custom_call.1} parent=47 // pred_region
          %s1375 = sand.u32 %s138, 1
          %s1376 = scalar_lea.sflag [#allocation9], %s1375
          %s1377 = sand.u32 %s138, 1
          %s1378 = smul.addr %s1377, 128
          %s1379 = scalar_lea.vmem [#allocation8], %s1378
          %1380 = dma.done %s1376, 2048
        $region56: #{tpu_custom_call.1} parent=47 // pred_fallthru
          _
      $region48: #{tpu_custom_call.1} parent=5 // pred_fallthru
        _
    $region6: #{tpu_custom_call.1} parent=1 // loop_footer
      %s24 = sadd.s32 1, %s20
    $region7: #{tpu_custom_call.1} parent=1 // loop_footer_branch
      %19 = sbr.rel target = $region3
    $region8: #{tpu_custom_call.1} parent=1 // loop_exit
      _
    %1381 = vsyncpa [#allocation3], 1
    %s1382 = scalar_lea.sflag [#allocation3], 1
    %1383 = vsyncpa %s1382, 1
    %1384 = vsyncpa [#allocation4], 1
    %s1385 = scalar_lea.sflag [#allocation4], 1
    %1386 = vsyncpa %s1385, 1
    %1387 = vsyncpa [#allocation9], 1
    %s1388 = scalar_lea.sflag [#allocation9], 1
    %1389 = vsyncpa %s1388, 1
    %1390 = vsyncpa [#allocation5], 1
    %s1391 = scalar_lea.sflag [#allocation5], 1
    %1392 = vsyncpa %s1391, 1

</llo_original>
